<compile_context>
chip_gen: v7x
topology: tpu7x:2x2x1
jax: 0.10.0
libtpu: 0.0.40
codegen_flags: <defaults>
</compile_context>

<pallas_src>
import functools

import numpy as np
import jax
import jax.numpy as jnp
from jax import lax
from jax.experimental import pallas as pl
from jax.experimental.pallas import tpu as pltpu

_VMEM = pl.BlockSpec(memory_space=pltpu.MemorySpace.VMEM)
_SMEM = pl.BlockSpec(memory_space=pltpu.MemorySpace.SMEM)

_SQRT5 = 2.23606797749979


def _ru8(r):
    """Round a (static) row count up to a multiple of 8 sublanes."""
    return (int(r) + 7) // 8 * 8


# ----------------------------------------------------------------------------
# The single fused kernel: NN-mean chain + 3 SVGP posterior covariances.
# ----------------------------------------------------------------------------
def _fused_forward_kernel(scal_ref,
                          x1_ref, x2_ref, x3_ref,
                          xo_ref, xsel_ref, xauc_ref,
                          wa_ref, zt_ref, b_ref,
                          means_ref, cov_ref,
                          *, kernel_types, jitter):
    """Entire StateSpaceSVGP forward in one launch.

    scal_ref (SMEM f32[16]): [1/ls1, 1/ls2, 1/ls3, os1, os2, os3,
                              b2_1, b2_2, b2_3, pad...]
    wa_ref:  per-MLP slabs [W1'(D,H); b1'(1,H); w2(1,H); w1m'(1,H)] with the
             LayerNorm affine and the cat([mean, x]) column folded in,
             8-row padded per stage and concatenated along rows.
    zt_ref:  per-GP slabs [(z/ls)^T (D,M); ||z/ls||^2 (1,M)], 8-row padded.
    b_ref:   (3, M, M) with B = Kzz^{-1} (S - Kzz) Kzz^{-1}.
    """
    f32 = jnp.float32
    n = x1_ref.shape[0]

    # ------------------------------------------------------------------
    # NN-mean chain (nn_mean1 -> nn_mean2 -> nn_mean3), intermediates in VMEM.
    # ------------------------------------------------------------------
    def head(pre, w2, b2):
        h = jnp.maximum(pre, 0.0)
        return jnp.sum(h * w2, axis=-1, keepdims=True) + b2

    def stage_params(off, d):
        w1 = wa_ref[off:off + d, :]
        b1 = wa_ref[off + d:off + d + 1, :]
        w2 = wa_ref[off + d + 1:off + d + 2, :]
        w1m = wa_ref[off + d + 2:off + d + 3, :]
        return w1, b1, w2, w1m

    d1, d2, d3 = x1_ref.shape[1], x2_ref.shape[1], x3_ref.shape[1]
    off1 = 0
    off2 = off1 + _ru8(d1 + 3)
    off3 = off2 + _ru8(d2 + 3)

    # Stage 1: LayerNorm(x1) -> MLP (LN affine folded into W1'/b1').
    w1, b1, w2, _ = stage_params(off1, d1)
    x1 = x1_ref[...].astype(f32)
    mu = jnp.mean(x1, axis=-1, keepdims=True)
    var = jnp.mean((x1 - mu) ** 2, axis=-1, keepdims=True)
    xh = (x1 - mu) * lax.rsqrt(var + 1e-5)
    m1 = head(jnp.dot(xh, w1, preferred_element_type=f32) + b1, w2, scal_ref[6])

    # Stages 2/3: LayerNorm(cat([m_prev, x], -1)) -> MLP; concat folded so the
    # mean contributes to the LN stats and one rank-1 row of the first Linear.
    def stage(m_prev, x_r, off, b2):
        x = x_r[...].astype(f32)
        d = x.shape[1]
        sw1, sb1, sw2, sw1m = stage_params(off, d)
        inv_dp1 = 1.0 / float(d + 1)
        smu = (jnp.sum(x, axis=-1, keepdims=True) + m_prev) * inv_dp1
        svar = (jnp.sum((x - smu) ** 2, axis=-1, keepdims=True)
                + (m_prev - smu) ** 2) * inv_dp1
        rstd = lax.rsqrt(svar + 1e-5)
        pre = (jnp.dot((x - smu) * rstd, sw1, preferred_element_type=f32)
               + ((m_prev - smu) * rstd) * sw1m + sb1)
        return head(pre, sw2, b2)

    m2 = stage(m1, x2_ref, off2, scal_ref[7])
    m3 = stage(m2, x3_ref, off3, scal_ref[8])

    means_ref[0, :, :] = m1
    means_ref[1, :, :] = m2
    means_ref[2, :, :] = m3

    # ------------------------------------------------------------------
    # SVGP posterior covariances: Kxx + Kxz @ B @ Kzx + jitter*I.
    # ------------------------------------------------------------------
    eye = (lax.broadcasted_iota(jnp.int32, (n, n), 0)
           == lax.broadcasted_iota(jnp.int32, (n, n), 1)).astype(f32)

    def gp_cov(x_full, zoff, dg, b_mat, inv_ls, osc, ktype):
        x = x_full * inv_ls                              # lengthscale units
        zt = zt_ref[zoff:zoff + dg, :]                   # (dg, M), prescaled
        zs = zt_ref[zoff + dg:zoff + dg + 1, :]          # (1, M) squared norms
        xsq = x * x
        xs = jnp.sum(xsq, axis=-1, keepdims=True)                         # (N,1)
        ones_row = jnp.ones((1, dg), f32)
        xs_row = lax.dot_general(ones_row, xsq, (((1,), (1,)), ((), ())),
                                 preferred_element_type=f32)              # (1,N)
        xxT = lax.dot_general(x, x, (((1,), (1,)), ((), ())),
                              preferred_element_type=f32)                 # (N,N)
        xzT = jnp.dot(x, zt, preferred_element_type=f32)                  # (N,M)
        d2_xx = jnp.maximum(xs + xs_row - 2.0 * xxT, 0.0)
        d2_xz = jnp.maximum(xs + zs - 2.0 * xzT, 0.0)

        if ktype == "rbf":                    # compile-time specialization
            kxx = osc * jnp.exp(-0.5 * d2_xx)
            kxz = osc * jnp.exp(-0.5 * d2_xz)
        else:                                 # Matern nu = 2.5
            def matern(d2):
                d = jnp.sqrt(d2)
                return osc * ((1.0 + _SQRT5 * d + (5.0 / 3.0) * d2)
                              * jnp.exp(-_SQRT5 * d))
            kxx, kxz = matern(d2_xx), matern(d2_xz)

        tmp = jnp.dot(kxz, b_mat, preferred_element_type=f32)             # (N,M)
        corr = lax.dot_general(tmp, kxz, (((1,), (1,)), ((), ())),
                               preferred_element_type=f32)                # (N,N)
        return kxx + corr + jitter * eye

    def splice_mean(x_r, m):
        # Last feature column was zero-padded by the wrapper; write m there.
        x0 = x_r[...].astype(f32)
        col = lax.broadcasted_iota(jnp.int32, x0.shape, 1)
        return jnp.where(col == x0.shape[1] - 1, m, x0)

    g1, g2, g3 = xo_ref.shape[1], xsel_ref.shape[1], xauc_ref.shape[1]
    zoff1 = 0
    zoff2 = zoff1 + _ru8(g1 + 1)
    zoff3 = zoff2 + _ru8(g2 + 1)

    cov_ref[0, :, :] = gp_cov(xo_ref[...].astype(f32), zoff1, g1,
                              b_ref[0, :, :], scal_ref[0], scal_ref[3],
                              kernel_types[0])
    cov_ref[1, :, :] = gp_cov(splice_mean(xsel_ref, m2), zoff2, g2,
                              b_ref[1, :, :], scal_ref[1], scal_ref[4],
                              kernel_types[1])
    cov_ref[2, :, :] = gp_cov(splice_mean(xauc_ref, m3), zoff3, g3,
                              b_ref[2, :, :], scal_ref[2], scal_ref[5],
                              kernel_types[2])


def fused_state_space_svgp(params, x_nn1, x_nn2, x_nn3,
                           x_offer, x_sel_pad, x_auc_pad,
                           kernel_types, jitter=1e-9):
    n = x_nn1.shape[0]
    kernel = functools.partial(_fused_forward_kernel,
                               kernel_types=kernel_types, jitter=jitter)
    return pl.pallas_call(
        kernel,
        out_shape=(jax.ShapeDtypeStruct((3, n, 1), jnp.float32),
                   jax.ShapeDtypeStruct((3, n, n), jnp.float32)),
        in_specs=[_SMEM] + [_VMEM] * 9,
        out_specs=(_VMEM, _VMEM),
    )(params["scal"], x_nn1, x_nn2, x_nn3, x_offer, x_sel_pad, x_auc_pad,
      params["wa"], params["zt"], params["b"])


def state_space_svgp_forward(params, x_nn1, x_nn2, x_nn3,
                             x_offer, x_offer_select, x_auction,
                             kernel_types=("rbf", "matern", "matern")):
    # One zero column per mean-augmented GP input; the kernel splices the NN
    # mean into it in VMEM (no host-side (3,N,dpad) scatter, no HBM round trip).
    x_sel_pad = jnp.pad(x_offer_select, ((0, 0), (0, 1)))
    x_auc_pad = jnp.pad(x_auction, ((0, 0), (0, 1)))
    means, covars = fused_state_space_svgp(
        params, x_nn1, x_nn2, x_nn3, x_offer, x_sel_pad, x_auc_pad,
        kernel_types)
    # TODO(synk): gpytorch.distributions.MultivariateNormal has no Pallas
    # equivalent; each "dist" is returned as a (mean, covariance) tuple.
    dist1 = (means[0, :, 0], covars[0])
    dist2 = (means[1, :, 0], covars[1])
    dist3 = (means[2, :, 0], covars[2])
    return dist1, dist2, dist3


# ----------------------------------------------------------------------------
# Plain-JAX parameter construction / one-time packing (input-independent).
# ----------------------------------------------------------------------------
def _kernel_mat(a, b, lengthscale, outputscale, kernel_type):
    hi = lax.Precision.HIGHEST
    d2 = jnp.maximum(jnp.sum(a * a, -1, keepdims=True)
                     + jnp.sum(b * b, -1)[None, :]
                     - 2.0 * jnp.dot(a, b.T, precision=hi), 0.0)
    if kernel_type == "rbf":
        return outputscale * jnp.exp(-0.5 * d2 / lengthscale ** 2)
    d = jnp.sqrt(d2) / lengthscale
    s5 = jnp.sqrt(5.0)
    return outputscale * (1.0 + s5 * d + (5.0 / 3.0) * d * d) * jnp.exp(-s5 * d)


def make_mlp_params(key, in_dim, hidden):
    k = jax.random.split(key, 6)
    s1 = 1.0 / jnp.sqrt(jnp.float32(in_dim))
    s2 = 1.0 / jnp.sqrt(jnp.float32(hidden))
    return dict(
        # Non-default LayerNorm affine so the fold is actually exercised.
        gamma=1.0 + 0.1 * jax.random.normal(k[4], (1, in_dim), jnp.float32),
        beta=0.1 * jax.random.normal(k[5], (1, in_dim), jnp.float32),
        w1=s1 * jax.random.normal(k[0], (in_dim, hidden), jnp.float32),
        b1=s1 * jax.random.normal(k[1], (1, hidden), jnp.float32),
        w2=s2 * jax.random.normal(k[2], (1, hidden), jnp.float32),   # Linear(H,1)
        b2=s2 * jax.random.normal(k[3], (1, 1), jnp.float32),
    )


def make_svgp_params(key, input_dim, num_inducing, kernel_type):
    kz, ks = jax.random.split(key, 2)
    z = jax.random.normal(kz, (num_inducing, input_dim), jnp.float32)
    lengthscale = jnp.float32(1.0 + 0.1 * (input_dim % 3))
    outputscale = jnp.float32(0.8)
    l_raw = 0.1 * jax.random.normal(ks, (num_inducing, num_inducing), jnp.float32)
    l_mat = jnp.tril(l_raw) + 0.5 * jnp.eye(num_inducing, dtype=jnp.float32)
    s_mat = l_mat @ l_mat.T
    # cholesky_jitter(1e-4) from the reference forward applied to Kzz.
    kzz = (_kernel_mat(z, z, lengthscale, outputscale, kernel_type)
           + 1e-4 * jnp.eye(num_inducing, dtype=jnp.float32))
    kzz_inv = jnp.linalg.inv(kzz)
    b_mat = kzz_inv @ (s_mat - kzz) @ kzz_inv
    return dict(z=z, lengthscale=lengthscale, outputscale=outputscale,
                b=b_mat, kernel_type=kernel_type)


def _nn_slab_first(p):
    # Fold the LayerNorm affine into the first Linear:
    #   (xhat*g + b) @ W1 + b1 = xhat @ (diag(g) W1) + (b1 + b @ W1).
    w1_eff = p["gamma"].T * p["w1"]
    b1_eff = p["b1"] + jnp.dot(p["beta"], p["w1"])
    w1m_eff = jnp.zeros_like(p["b1"])            # no mean column in stage 1
    slab = jnp.concatenate([w1_eff, b1_eff, p["w2"], w1m_eff], axis=0)
    return slab, p["b2"][0, 0]


def _nn_slab_mean(p):
    # torch.cat([mean, x], -1): feature 0 of LN / Linear1 is the mean column.
    gm, gx = p["gamma"][:, :1], p["gamma"][:, 1:]
    bm, bx = p["beta"][:, :1], p["beta"][:, 1:]
    w1m, w1x = p["w1"][:1, :], p["w1"][1:, :]
    w1x_eff = gx.T * w1x
    b1_eff = p["b1"] + bm * w1m + jnp.dot(bx, w1x)
    w1m_eff = gm * w1m
    slab = jnp.concatenate([w1x_eff, b1_eff, p["w2"], w1m_eff], axis=0)
    return slab, p["b2"][0, 0]


def _pad_rows(a, rows):
    return jnp.pad(a, ((0, rows - a.shape[0]), (0, 0)))


def _gp_slab(g):
    inv_ls = 1.0 / g["lengthscale"]
    z_s = g["z"] * inv_ls                         # prescale: d2 in ls units
    zt = jnp.concatenate([z_s.T, jnp.sum(z_s * z_s, axis=-1)[None, :]], axis=0)
    return zt, inv_ls, g["outputscale"]


def prep_params(nn1, nn2, nn3, gp1, gp2, gp3):
    """One-time packing of every parameter into 3 VMEM slabs + 1 SMEM bank."""
    wa1, b2_1 = _nn_slab_first(nn1)
    wa2, b2_2 = _nn_slab_mean(nn2)
    wa3, b2_3 = _nn_slab_mean(nn3)
    wa = jnp.concatenate([_pad_rows(wa1, _ru8(wa1.shape[0])),
                          _pad_rows(wa2, _ru8(wa2.shape[0])),
                          _pad_rows(wa3, _ru8(wa3.shape[0]))], axis=0)

    zt1, il1, os1 = _gp_slab(gp1)
    zt2, il2, os2 = _gp_slab(gp2)
    zt3, il3, os3 = _gp_slab(gp3)
    zt = jnp.concatenate([_pad_rows(zt1, _ru8(zt1.shape[0])),
                          _pad_rows(zt2, _ru8(zt2.shape[0])),
                          _pad_rows(zt3, _ru8(zt3.shape[0]))], axis=0)

    b = jnp.stack([gp1["b"], gp2["b"], gp3["b"]])
    scal = jnp.concatenate([
        jnp.stack([il1, il2, il3, os1, os2, os3,
                   b2_1, b2_2, b2_3]).astype(jnp.float32),
        jnp.zeros((7,), jnp.float32)])
    return dict(wa=wa, zt=zt, b=b, scal=scal)


# ----------------------------------------------------------------------------
# Demo + reference check.
# ----------------------------------------------------------------------------
if __name__ == "__main__":
    nn1_dims, nn2_dims, nn3_dims = 16, 12, 12
    offer_gp_dims, offer_select_gp_dims, auction_gp_dims = 8, 6, 6
    hidden = 32
    num_inducing = 16
    N = 8

    pkey = jax.random.PRNGKey(42)
    pk = jax.random.split(pkey, 6)
    raw = dict(
        nn1=make_mlp_params(pk[0], nn1_dims, hidden),
        nn2=make_mlp_params(pk[1], nn2_dims + 1, hidden),
        nn3=make_mlp_params(pk[2], nn3_dims + 1, hidden),
        gp1=make_svgp_params(pk[3], offer_gp_dims, num_inducing, "rbf"),
        gp2=make_svgp_params(pk[4], offer_select_gp_dims + 1, num_inducing, "matern"),
        gp3=make_svgp_params(pk[5], auction_gp_dims + 1, num_inducing, "matern"),
    )
    params = prep_params(raw["nn1"], raw["nn2"], raw["nn3"],
                         raw["gp1"], raw["gp2"], raw["gp3"])

    dkey = jax.random.PRNGKey(0)
    dk = jax.random.split(dkey, 6)
    x_nn1 = jax.random.normal(dk[0], (N, nn1_dims), jnp.float32)
    x_nn2 = jax.random.normal(dk[1], (N, nn2_dims), jnp.float32)
    x_nn3 = jax.random.normal(dk[2], (N, nn3_dims), jnp.float32)
    x_offer = jax.random.normal(dk[3], (N, offer_gp_dims), jnp.float32)
    x_offer_select = jax.random.normal(dk[4], (N, offer_select_gp_dims), jnp.float32)
    x_auction = jax.random.normal(dk[5], (N, auction_gp_dims), jnp.float32)

    forward = jax.jit(state_space_svgp_forward)
    (m1, c1), (m2, c2), (m3, c3) = forward(
        params, x_nn1, x_nn2, x_nn3, x_offer, x_offer_select, x_auction)
    jax.block_until_ready((m1, c1, m2, c2, m3, c3))

    assert m1.shape == (N,) and c1.shape == (N, N)
    assert m2.shape == (N,) and c2.shape == (N, N)
    assert m3.shape == (N,) and c3.shape == (N, N)

    # --- plain-JAX reference check (structural correctness, loose fp tol) ---
    hi = lax.Precision.HIGHEST

    def ref_ln_mlp(x, p):
        mu = jnp.mean(x, -1, keepdims=True)
        var = jnp.mean((x - mu) ** 2, -1, keepdims=True)
        y = (x - mu) * lax.rsqrt(var + 1e-5) * p["gamma"] + p["beta"]
        h = jnp.maximum(jnp.dot(y, p["w1"], precision=hi) + p["b1"], 0.0)
        return jnp.sum(h * p["w2"], -1, keepdims=True) + p["b2"]

    def ref_cov(x, gp):
        kxx = _kernel_mat(x, x, gp["lengthscale"], gp["outputscale"], gp["kernel_type"])
        kxz = _kernel_mat(x, gp["z"], gp["lengthscale"], gp["outputscale"], gp["kernel_type"])
        corr = jnp.dot(jnp.dot(kxz, gp["b"], precision=hi), kxz.T, precision=hi)
        return kxx + corr + 1e-9 * jnp.eye(x.shape[0], dtype=jnp.float32)

    rm1 = ref_ln_mlp(x_nn1, raw["nn1"])
    rm2 = ref_ln_mlp(jnp.concatenate([rm1, x_nn2], -1), raw["nn2"])
    rm3 = ref_ln_mlp(jnp.concatenate([rm2, x_nn3], -1), raw["nn3"])
    rc1 = ref_cov(x_offer, raw["gp1"])
    rc2 = ref_cov(jnp.concatenate([x_offer_select, rm2], -1), raw["gp2"])
    rc3 = ref_cov(jnp.concatenate([x_auction, rm3], -1), raw["gp3"])

    tol = dict(rtol=2e-2, atol=2e-2)
    np.testing.assert_allclose(np.asarray(m1), np.asarray(rm1[:, 0]), **tol)
    np.testing.assert_allclose(np.asarray(m2), np.asarray(rm2[:, 0]), **tol)
    np.testing.assert_allclose(np.asarray(m3), np.asarray(rm3[:, 0]), **tol)
    np.testing.assert_allclose(np.asarray(c1), np.asarray(rc1), **tol)
    np.testing.assert_allclose(np.asarray(c2), np.asarray(rc2), **tol)
    np.testing.assert_allclose(np.asarray(c3), np.asarray(rc3), **tol)

    print("KERNEL_OK")
</pallas_src>

<mosaic_0001>
module attributes {stable_mosaic.version = 11 : i64} {
  func.func @_fused_forward_kernel(%arg0: memref<16xf32, #tpu.memory_space<smem>>, %arg1: memref<8x16xf32, #tpu.memory_space<vmem>>, %arg2: memref<8x12xf32, #tpu.memory_space<vmem>>, %arg3: memref<8x12xf32, #tpu.memory_space<vmem>>, %arg4: memref<8x8xf32, #tpu.memory_space<vmem>>, %arg5: memref<8x7xf32, #tpu.memory_space<vmem>>, %arg6: memref<8x7xf32, #tpu.memory_space<vmem>>, %arg7: memref<56x32xf32, #tpu.memory_space<vmem>>, %arg8: memref<32x16xf32, #tpu.memory_space<vmem>>, %arg9: memref<3x16x16xf32, #tpu.memory_space<vmem>>, %arg10: memref<3x8x1xf32, #tpu.memory_space<vmem>>, %arg11: memref<3x8x8xf32, #tpu.memory_space<vmem>>) attributes {dimension_semantics = [], scalar_prefetch = 0 : i64, scratch_operands = 0 : i64, tpu.core_type = #tpu.core_type<tc>} {
    %c0 = arith.constant 0 : index
    %c0_0 = arith.constant 0 : index
    %0 = vector.load %arg7[%c0, %c0_0] : memref<56x32xf32, #tpu.memory_space<vmem>>, vector<16x32xf32>
    %c16 = arith.constant 16 : index
    %c0_1 = arith.constant 0 : index
    %1 = vector.load %arg7[%c16, %c0_1] : memref<56x32xf32, #tpu.memory_space<vmem>>, vector<1x32xf32>
    %c17 = arith.constant 17 : index
    %c0_2 = arith.constant 0 : index
    %2 = vector.load %arg7[%c17, %c0_2] : memref<56x32xf32, #tpu.memory_space<vmem>>, vector<1x32xf32>
    %c0_3 = arith.constant 0 : index
    %c0_4 = arith.constant 0 : index
    %3 = vector.load %arg1[%c0_3, %c0_4] : memref<8x16xf32, #tpu.memory_space<vmem>>, vector<8x16xf32>
    %cst = arith.constant dense<0.000000e+00> : vector<8xf32>
    %4 = vector.multi_reduction <add>, %3, %cst [1] : vector<8x16xf32> to vector<8xf32>
    %5 = vector.shape_cast %4 : vector<8xf32> to vector<8x1xf32>
    %cst_5 = arith.constant 1.600000e+01 : f32
    %6 = vector.broadcast %cst_5 : f32 to vector<8x1xf32>
    %7 = arith.divf %5, %6 : vector<8x1xf32>
    %8 = vector.broadcast %7 : vector<8x1xf32> to vector<8x16xf32>
    %9 = arith.subf %3, %8 : vector<8x16xf32>
    %10 = arith.mulf %9, %9 : vector<8x16xf32>
    %cst_6 = arith.constant dense<0.000000e+00> : vector<8xf32>
    %11 = vector.multi_reduction <add>, %10, %cst_6 [1] : vector<8x16xf32> to vector<8xf32>
    %12 = vector.shape_cast %11 : vector<8xf32> to vector<8x1xf32>
    %cst_7 = arith.constant 1.600000e+01 : f32
    %13 = vector.broadcast %cst_7 : f32 to vector<8x1xf32>
    %14 = arith.divf %12, %13 : vector<8x1xf32>
    %15 = vector.broadcast %7 : vector<8x1xf32> to vector<8x16xf32>
    %16 = arith.subf %3, %15 : vector<8x16xf32>
    %cst_8 = arith.constant 9.99999974E-6 : f32
    %17 = vector.broadcast %cst_8 : f32 to vector<8x1xf32>
    %18 = arith.addf %14, %17 : vector<8x1xf32>
    %19 = math.rsqrt %18 : vector<8x1xf32>
    %20 = vector.broadcast %19 : vector<8x1xf32> to vector<8x16xf32>
    %21 = arith.mulf %16, %20 : vector<8x16xf32>
    %cst_9 = arith.constant dense<0.000000e+00> : vector<8x32xf32>
    %22 = tpu.matmul %21, %0, %cst_9 {dimension_numbers = #tpu.dot_dimension_numbers<[1], [0], [0], [1], [0, 0, 1, 1], [], []>} : vector<8x16xf32>, vector<16x32xf32>, vector<8x32xf32> -> vector<8x32xf32>
    %23 = vector.broadcast %1 : vector<1x32xf32> to vector<8x32xf32>
    %24 = arith.addf %22, %23 : vector<8x32xf32>
    %c6 = arith.constant 6 : index
    %25 = memref.load %arg0[%c6] : memref<16xf32, #tpu.memory_space<smem>>
    %cst_10 = arith.constant 0.000000e+00 : f32
    %26 = vector.broadcast %cst_10 : f32 to vector<8x32xf32>
    %27 = arith.maximumf %24, %26 : vector<8x32xf32>
    %28 = vector.broadcast %2 : vector<1x32xf32> to vector<8x32xf32>
    %29 = arith.mulf %27, %28 : vector<8x32xf32>
    %cst_11 = arith.constant dense<0.000000e+00> : vector<8xf32>
    %30 = vector.multi_reduction <add>, %29, %cst_11 [1] : vector<8x32xf32> to vector<8xf32>
    %31 = vector.shape_cast %30 : vector<8xf32> to vector<8x1xf32>
    %32 = vector.broadcast %25 : f32 to vector<8x1xf32>
    %33 = arith.addf %31, %32 : vector<8x1xf32>
    %c7 = arith.constant 7 : index
    %34 = memref.load %arg0[%c7] : memref<16xf32, #tpu.memory_space<smem>>
    %c0_12 = arith.constant 0 : index
    %c0_13 = arith.constant 0 : index
    %35 = vector.load %arg2[%c0_12, %c0_13] : memref<8x12xf32, #tpu.memory_space<vmem>>, vector<8x12xf32>
    %c24 = arith.constant 24 : index
    %c0_14 = arith.constant 0 : index
    %36 = vector.load %arg7[%c24, %c0_14] : memref<56x32xf32, #tpu.memory_space<vmem>>, vector<12x32xf32>
    %c36 = arith.constant 36 : index
    %c0_15 = arith.constant 0 : index
    %37 = vector.load %arg7[%c36, %c0_15] : memref<56x32xf32, #tpu.memory_space<vmem>>, vector<1x32xf32>
    %c37 = arith.constant 37 : index
    %c0_16 = arith.constant 0 : index
    %38 = vector.load %arg7[%c37, %c0_16] : memref<56x32xf32, #tpu.memory_space<vmem>>, vector<1x32xf32>
    %c38 = arith.constant 38 : index
    %c0_17 = arith.constant 0 : index
    %39 = vector.load %arg7[%c38, %c0_17] : memref<56x32xf32, #tpu.memory_space<vmem>>, vector<1x32xf32>
    %cst_18 = arith.constant dense<0.000000e+00> : vector<8xf32>
    %40 = vector.multi_reduction <add>, %35, %cst_18 [1] : vector<8x12xf32> to vector<8xf32>
    %41 = vector.shape_cast %40 : vector<8xf32> to vector<8x1xf32>
    %42 = arith.addf %41, %33 : vector<8x1xf32>
    %cst_19 = arith.constant 0.0769230798 : f32
    %43 = vector.broadcast %cst_19 : f32 to vector<8x1xf32>
    %44 = arith.mulf %42, %43 : vector<8x1xf32>
    %45 = vector.broadcast %44 : vector<8x1xf32> to vector<8x12xf32>
    %46 = arith.subf %35, %45 : vector<8x12xf32>
    %47 = arith.mulf %46, %46 : vector<8x12xf32>
    %cst_20 = arith.constant dense<0.000000e+00> : vector<8xf32>
    %48 = vector.multi_reduction <add>, %47, %cst_20 [1] : vector<8x12xf32> to vector<8xf32>
    %49 = vector.shape_cast %48 : vector<8xf32> to vector<8x1xf32>
    %50 = arith.subf %33, %44 : vector<8x1xf32>
    %51 = arith.mulf %50, %50 : vector<8x1xf32>
    %52 = arith.addf %49, %51 : vector<8x1xf32>
    %cst_21 = arith.constant 0.0769230798 : f32
    %53 = vector.broadcast %cst_21 : f32 to vector<8x1xf32>
    %54 = arith.mulf %52, %53 : vector<8x1xf32>
    %cst_22 = arith.constant 9.99999974E-6 : f32
    %55 = vector.broadcast %cst_22 : f32 to vector<8x1xf32>
    %56 = arith.addf %54, %55 : vector<8x1xf32>
    %57 = math.rsqrt %56 : vector<8x1xf32>
    %58 = vector.broadcast %44 : vector<8x1xf32> to vector<8x12xf32>
    %59 = arith.subf %35, %58 : vector<8x12xf32>
    %60 = vector.broadcast %57 : vector<8x1xf32> to vector<8x12xf32>
    %61 = arith.mulf %59, %60 : vector<8x12xf32>
    %cst_23 = arith.constant dense<0.000000e+00> : vector<8x32xf32>
    %62 = tpu.matmul %61, %36, %cst_23 {dimension_numbers = #tpu.dot_dimension_numbers<[1], [0], [0], [1], [0, 0, 1, 1], [], []>} : vector<8x12xf32>, vector<12x32xf32>, vector<8x32xf32> -> vector<8x32xf32>
    %63 = arith.subf %33, %44 : vector<8x1xf32>
    %64 = arith.mulf %63, %57 : vector<8x1xf32>
    %65 = vector.broadcast %64 : vector<8x1xf32> to vector<8x32xf32>
    %66 = vector.broadcast %39 : vector<1x32xf32> to vector<8x32xf32>
    %67 = arith.mulf %65, %66 : vector<8x32xf32>
    %68 = arith.addf %62, %67 : vector<8x32xf32>
    %69 = vector.broadcast %37 : vector<1x32xf32> to vector<8x32xf32>
    %70 = arith.addf %68, %69 : vector<8x32xf32>
    %cst_24 = arith.constant 0.000000e+00 : f32
    %71 = vector.broadcast %cst_24 : f32 to vector<8x32xf32>
    %72 = arith.maximumf %70, %71 : vector<8x32xf32>
    %73 = vector.broadcast %38 : vector<1x32xf32> to vector<8x32xf32>
    %74 = arith.mulf %72, %73 : vector<8x32xf32>
    %cst_25 = arith.constant dense<0.000000e+00> : vector<8xf32>
    %75 = vector.multi_reduction <add>, %74, %cst_25 [1] : vector<8x32xf32> to vector<8xf32>
    %76 = vector.shape_cast %75 : vector<8xf32> to vector<8x1xf32>
    %77 = vector.broadcast %34 : f32 to vector<8x1xf32>
    %78 = arith.addf %76, %77 : vector<8x1xf32>
    %c8 = arith.constant 8 : index
    %79 = memref.load %arg0[%c8] : memref<16xf32, #tpu.memory_space<smem>>
    %c0_26 = arith.constant 0 : index
    %c0_27 = arith.constant 0 : index
    %80 = vector.load %arg3[%c0_26, %c0_27] : memref<8x12xf32, #tpu.memory_space<vmem>>, vector<8x12xf32>
    %c40 = arith.constant 40 : index
    %c0_28 = arith.constant 0 : index
    %81 = vector.load %arg7[%c40, %c0_28] : memref<56x32xf32, #tpu.memory_space<vmem>>, vector<12x32xf32>
    %c52 = arith.constant 52 : index
    %c0_29 = arith.constant 0 : index
    %82 = vector.load %arg7[%c52, %c0_29] : memref<56x32xf32, #tpu.memory_space<vmem>>, vector<1x32xf32>
    %c53 = arith.constant 53 : index
    %c0_30 = arith.constant 0 : index
    %83 = vector.load %arg7[%c53, %c0_30] : memref<56x32xf32, #tpu.memory_space<vmem>>, vector<1x32xf32>
    %c54 = arith.constant 54 : index
    %c0_31 = arith.constant 0 : index
    %84 = vector.load %arg7[%c54, %c0_31] : memref<56x32xf32, #tpu.memory_space<vmem>>, vector<1x32xf32>
    %cst_32 = arith.constant dense<0.000000e+00> : vector<8xf32>
    %85 = vector.multi_reduction <add>, %80, %cst_32 [1] : vector<8x12xf32> to vector<8xf32>
    %86 = vector.shape_cast %85 : vector<8xf32> to vector<8x1xf32>
    %87 = arith.addf %86, %78 : vector<8x1xf32>
    %cst_33 = arith.constant 0.0769230798 : f32
    %88 = vector.broadcast %cst_33 : f32 to vector<8x1xf32>
    %89 = arith.mulf %87, %88 : vector<8x1xf32>
    %90 = vector.broadcast %89 : vector<8x1xf32> to vector<8x12xf32>
    %91 = arith.subf %80, %90 : vector<8x12xf32>
    %92 = arith.mulf %91, %91 : vector<8x12xf32>
    %cst_34 = arith.constant dense<0.000000e+00> : vector<8xf32>
    %93 = vector.multi_reduction <add>, %92, %cst_34 [1] : vector<8x12xf32> to vector<8xf32>
    %94 = vector.shape_cast %93 : vector<8xf32> to vector<8x1xf32>
    %95 = arith.subf %78, %89 : vector<8x1xf32>
    %96 = arith.mulf %95, %95 : vector<8x1xf32>
    %97 = arith.addf %94, %96 : vector<8x1xf32>
    %cst_35 = arith.constant 0.0769230798 : f32
    %98 = vector.broadcast %cst_35 : f32 to vector<8x1xf32>
    %99 = arith.mulf %97, %98 : vector<8x1xf32>
    %cst_36 = arith.constant 9.99999974E-6 : f32
    %100 = vector.broadcast %cst_36 : f32 to vector<8x1xf32>
    %101 = arith.addf %99, %100 : vector<8x1xf32>
    %102 = math.rsqrt %101 : vector<8x1xf32>
    %103 = vector.broadcast %89 : vector<8x1xf32> to vector<8x12xf32>
    %104 = arith.subf %80, %103 : vector<8x12xf32>
    %105 = vector.broadcast %102 : vector<8x1xf32> to vector<8x12xf32>
    %106 = arith.mulf %104, %105 : vector<8x12xf32>
    %cst_37 = arith.constant dense<0.000000e+00> : vector<8x32xf32>
    %107 = tpu.matmul %106, %81, %cst_37 {dimension_numbers = #tpu.dot_dimension_numbers<[1], [0], [0], [1], [0, 0, 1, 1], [], []>} : vector<8x12xf32>, vector<12x32xf32>, vector<8x32xf32> -> vector<8x32xf32>
    %108 = arith.subf %78, %89 : vector<8x1xf32>
    %109 = arith.mulf %108, %102 : vector<8x1xf32>
    %110 = vector.broadcast %109 : vector<8x1xf32> to vector<8x32xf32>
    %111 = vector.broadcast %84 : vector<1x32xf32> to vector<8x32xf32>
    %112 = arith.mulf %110, %111 : vector<8x32xf32>
    %113 = arith.addf %107, %112 : vector<8x32xf32>
    %114 = vector.broadcast %82 : vector<1x32xf32> to vector<8x32xf32>
    %115 = arith.addf %113, %114 : vector<8x32xf32>
    %cst_38 = arith.constant 0.000000e+00 : f32
    %116 = vector.broadcast %cst_38 : f32 to vector<8x32xf32>
    %117 = arith.maximumf %115, %116 : vector<8x32xf32>
    %118 = vector.broadcast %83 : vector<1x32xf32> to vector<8x32xf32>
    %119 = arith.mulf %117, %118 : vector<8x32xf32>
    %cst_39 = arith.constant dense<0.000000e+00> : vector<8xf32>
    %120 = vector.multi_reduction <add>, %119, %cst_39 [1] : vector<8x32xf32> to vector<8xf32>
    %121 = vector.shape_cast %120 : vector<8xf32> to vector<8x1xf32>
    %122 = vector.broadcast %79 : f32 to vector<8x1xf32>
    %123 = arith.addf %121, %122 : vector<8x1xf32>
    %c0_40 = arith.constant 0 : index
    %c0_41 = arith.constant 0 : index
    %c0_42 = arith.constant 0 : index
    %124 = vector.load %arg10[%c0_40, %c0_41, %c0_42] : memref<3x8x1xf32, #tpu.memory_space<vmem>>, vector<1x8x1xf32>
    %125 = vector.shape_cast %124 : vector<1x8x1xf32> to vector<8x1xf32>
    %126 = vector.shape_cast %33 : vector<8x1xf32> to vector<1x8x1xf32>
    tpu.vector_store %arg10[%c0_40, %c0_41, %c0_42], %126 {strides = array<i32>} : memref<3x8x1xf32, #tpu.memory_space<vmem>>, vector<1x8x1xf32>,
    %c1 = arith.constant 1 : index
    %c0_43 = arith.constant 0 : index
    %c0_44 = arith.constant 0 : index
    %127 = vector.load %arg10[%c1, %c0_43, %c0_44] : memref<3x8x1xf32, #tpu.memory_space<vmem>>, vector<1x8x1xf32>
    %128 = vector.shape_cast %127 : vector<1x8x1xf32> to vector<8x1xf32>
    %129 = vector.shape_cast %78 : vector<8x1xf32> to vector<1x8x1xf32>
    tpu.vector_store %arg10[%c1, %c0_43, %c0_44], %129 {strides = array<i32>} : memref<3x8x1xf32, #tpu.memory_space<vmem>>, vector<1x8x1xf32>,
    %c2 = arith.constant 2 : index
    %c0_45 = arith.constant 0 : index
    %c0_46 = arith.constant 0 : index
    %130 = vector.load %arg10[%c2, %c0_45, %c0_46] : memref<3x8x1xf32, #tpu.memory_space<vmem>>, vector<1x8x1xf32>
    %131 = vector.shape_cast %130 : vector<1x8x1xf32> to vector<8x1xf32>
    %132 = vector.shape_cast %123 : vector<8x1xf32> to vector<1x8x1xf32>
    tpu.vector_store %arg10[%c2, %c0_45, %c0_46], %132 {strides = array<i32>} : memref<3x8x1xf32, #tpu.memory_space<vmem>>, vector<1x8x1xf32>,
    %133 = tpu.iota {dimensions = array<i32: 0>} : vector<8x8xi32>
    %134 = tpu.iota {dimensions = array<i32: 1>} : vector<8x8xi32>
    %135 = arith.cmpi eq, %133, %134 : vector<8x8xi32>
    %136 = arith.extui %135 : vector<8x8xi1> to vector<8x8xi32>
    %137 = arith.sitofp %136 : vector<8x8xi32> to vector<8x8xf32>
    %c0_47 = arith.constant 0 : index
    %c0_48 = arith.constant 0 : index
    %138 = vector.load %arg4[%c0_47, %c0_48] : memref<8x8xf32, #tpu.memory_space<vmem>>, vector<8x8xf32>
    %c0_49 = arith.constant 0 : index
    %c0_50 = arith.constant 0 : index
    %c0_51 = arith.constant 0 : index
    %139 = vector.load %arg9[%c0_49, %c0_50, %c0_51] : memref<3x16x16xf32, #tpu.memory_space<vmem>>, vector<1x16x16xf32>
    %140 = vector.shape_cast %139 : vector<1x16x16xf32> to vector<16x16xf32>
    %c0_52 = arith.constant 0 : index
    %141 = memref.load %arg0[%c0_52] : memref<16xf32, #tpu.memory_space<smem>>
    %c3 = arith.constant 3 : index
    %142 = memref.load %arg0[%c3] : memref<16xf32, #tpu.memory_space<smem>>
    %143 = vector.broadcast %141 : f32 to vector<8x8xf32>
    %144 = arith.mulf %138, %143 : vector<8x8xf32>
    %c0_53 = arith.constant 0 : index
    %c0_54 = arith.constant 0 : index
    %145 = vector.load %arg8[%c0_53, %c0_54] : memref<32x16xf32, #tpu.memory_space<vmem>>, vector<8x16xf32>
    %c8_55 = arith.constant 8 : index
    %c0_56 = arith.constant 0 : index
    %146 = vector.load %arg8[%c8_55, %c0_56] : memref<32x16xf32, #tpu.memory_space<vmem>>, vector<1x16xf32>
    %147 = arith.mulf %144, %144 : vector<8x8xf32>
    %cst_57 = arith.constant dense<0.000000e+00> : vector<8xf32>
    %148 = vector.multi_reduction <add>, %147, %cst_57 [1] : vector<8x8xf32> to vector<8xf32>
    %149 = vector.shape_cast %148 : vector<8xf32> to vector<8x1xf32>
    %cst_58 = arith.constant 1.000000e+00 : f32
    %150 = vector.broadcast %cst_58 : f32 to vector<1x8xf32>
    %cst_59 = arith.constant dense<0.000000e+00> : vector<1x8xf32>
    %151 = tpu.matmul %150, %147, %cst_59 {dimension_numbers = #tpu.dot_dimension_numbers<[1], [1], [0], [0], [0, 0, 1, 0], [], []>} : vector<1x8xf32>, vector<8x8xf32>, vector<1x8xf32> -> vector<1x8xf32>
    %cst_60 = arith.constant dense<0.000000e+00> : vector<8x8xf32>
    %152 = tpu.matmul %144, %144, %cst_60 {dimension_numbers = #tpu.dot_dimension_numbers<[1], [1], [0], [0], [0, 0, 1, 0], [], []>} : vector<8x8xf32>, vector<8x8xf32>, vector<8x8xf32> -> vector<8x8xf32>
    %cst_61 = arith.constant dense<0.000000e+00> : vector<8x16xf32>
    %153 = tpu.matmul %144, %145, %cst_61 {dimension_numbers = #tpu.dot_dimension_numbers<[1], [0], [0], [1], [0, 0, 1, 1], [], []>} : vector<8x8xf32>, vector<8x16xf32>, vector<8x16xf32> -> vector<8x16xf32>
    %154 = vector.broadcast %149 : vector<8x1xf32> to vector<8x8xf32>
    %155 = vector.broadcast %151 : vector<1x8xf32> to vector<8x8xf32>
    %156 = arith.addf %154, %155 : vector<8x8xf32>
    %cst_62 = arith.constant 2.000000e+00 : f32
    %157 = vector.broadcast %cst_62 : f32 to vector<8x8xf32>
    %158 = arith.mulf %157, %152 : vector<8x8xf32>
    %159 = arith.subf %156, %158 : vector<8x8xf32>
    %cst_63 = arith.constant 0.000000e+00 : f32
    %160 = vector.broadcast %cst_63 : f32 to vector<8x8xf32>
    %161 = arith.maximumf %159, %160 : vector<8x8xf32>
    %162 = vector.broadcast %149 : vector<8x1xf32> to vector<8x16xf32>
    %163 = vector.broadcast %146 : vector<1x16xf32> to vector<8x16xf32>
    %164 = arith.addf %162, %163 : vector<8x16xf32>
    %cst_64 = arith.constant 2.000000e+00 : f32
    %165 = vector.broadcast %cst_64 : f32 to vector<8x16xf32>
    %166 = arith.mulf %165, %153 : vector<8x16xf32>
    %167 = arith.subf %164, %166 : vector<8x16xf32>
    %cst_65 = arith.constant 0.000000e+00 : f32
    %168 = vector.broadcast %cst_65 : f32 to vector<8x16xf32>
    %169 = arith.maximumf %167, %168 : vector<8x16xf32>
    %cst_66 = arith.constant -5.000000e-01 : f32
    %170 = vector.broadcast %cst_66 : f32 to vector<8x8xf32>
    %171 = arith.mulf %170, %161 : vector<8x8xf32>
    %172 = math.exp %171 : vector<8x8xf32>
    %173 = vector.broadcast %142 : f32 to vector<8x8xf32>
    %174 = arith.mulf %173, %172 : vector<8x8xf32>
    %cst_67 = arith.constant -5.000000e-01 : f32
    %175 = vector.broadcast %cst_67 : f32 to vector<8x16xf32>
    %176 = arith.mulf %175, %169 : vector<8x16xf32>
    %177 = math.exp %176 : vector<8x16xf32>
    %178 = vector.broadcast %142 : f32 to vector<8x16xf32>
    %179 = arith.mulf %178, %177 : vector<8x16xf32>
    %cst_68 = arith.constant dense<0.000000e+00> : vector<8x16xf32>
    %180 = tpu.matmul %179, %140, %cst_68 {dimension_numbers = #tpu.dot_dimension_numbers<[1], [0], [0], [1], [0, 0, 1, 1], [], []>} : vector<8x16xf32>, vector<16x16xf32>, vector<8x16xf32> -> vector<8x16xf32>
    %cst_69 = arith.constant dense<0.000000e+00> : vector<8x8xf32>
    %181 = tpu.matmul %180, %179, %cst_69 {dimension_numbers = #tpu.dot_dimension_numbers<[1], [1], [0], [0], [0, 0, 1, 0], [], []>} : vector<8x16xf32>, vector<8x16xf32>, vector<8x8xf32> -> vector<8x8xf32>
    %182 = arith.addf %174, %181 : vector<8x8xf32>
    %cst_70 = arith.constant 9.99999971E-10 : f32
    %183 = vector.broadcast %cst_70 : f32 to vector<8x8xf32>
    %184 = arith.mulf %183, %137 : vector<8x8xf32>
    %185 = arith.addf %182, %184 : vector<8x8xf32>
    %c0_71 = arith.constant 0 : index
    %c0_72 = arith.constant 0 : index
    %c0_73 = arith.constant 0 : index
    %186 = vector.load %arg11[%c0_71, %c0_72, %c0_73] : memref<3x8x8xf32, #tpu.memory_space<vmem>>, vector<1x8x8xf32>
    %187 = vector.shape_cast %186 : vector<1x8x8xf32> to vector<8x8xf32>
    %188 = vector.shape_cast %185 : vector<8x8xf32> to vector<1x8x8xf32>
    tpu.vector_store %arg11[%c0_71, %c0_72, %c0_73], %188 {strides = array<i32>} : memref<3x8x8xf32, #tpu.memory_space<vmem>>, vector<1x8x8xf32>,
    %c0_74 = arith.constant 0 : index
    %c0_75 = arith.constant 0 : index
    %189 = vector.load %arg5[%c0_74, %c0_75] : memref<8x7xf32, #tpu.memory_space<vmem>>, vector<8x7xf32>
    %190 = tpu.iota {dimensions = array<i32: 1>} : vector<8x7xi32>
    %c6_i32 = arith.constant 6 : i32
    %191 = vector.broadcast %c6_i32 : i32 to vector<8x7xi32>
    %192 = arith.cmpi eq, %190, %191 : vector<8x7xi32>
    %193 = vector.shape_cast %78 : vector<8x1xf32> to vector<8x1xf32>
    %194 = vector.broadcast %193 : vector<8x1xf32> to vector<8x7xf32>
    %195 = arith.select %192, %194, %189 : vector<8x7xi1>, vector<8x7xf32>
    %c1_76 = arith.constant 1 : index
    %c0_77 = arith.constant 0 : index
    %c0_78 = arith.constant 0 : index
    %196 = vector.load %arg9[%c1_76, %c0_77, %c0_78] : memref<3x16x16xf32, #tpu.memory_space<vmem>>, vector<1x16x16xf32>
    %197 = vector.shape_cast %196 : vector<1x16x16xf32> to vector<16x16xf32>
    %c1_79 = arith.constant 1 : index
    %198 = memref.load %arg0[%c1_79] : memref<16xf32, #tpu.memory_space<smem>>
    %c4 = arith.constant 4 : index
    %199 = memref.load %arg0[%c4] : memref<16xf32, #tpu.memory_space<smem>>
    %200 = vector.broadcast %198 : f32 to vector<8x7xf32>
    %201 = arith.mulf %195, %200 : vector<8x7xf32>
    %c16_80 = arith.constant 16 : index
    %c0_81 = arith.constant 0 : index
    %202 = vector.load %arg8[%c16_80, %c0_81] : memref<32x16xf32, #tpu.memory_space<vmem>>, vector<7x16xf32>
    %c23 = arith.constant 23 : index
    %c0_82 = arith.constant 0 : index
    %203 = vector.load %arg8[%c23, %c0_82] : memref<32x16xf32, #tpu.memory_space<vmem>>, vector<1x16xf32>
    %204 = arith.mulf %201, %201 : vector<8x7xf32>
    %cst_83 = arith.constant dense<0.000000e+00> : vector<8xf32>
    %205 = vector.multi_reduction <add>, %204, %cst_83 [1] : vector<8x7xf32> to vector<8xf32>
    %206 = vector.shape_cast %205 : vector<8xf32> to vector<8x1xf32>
    %cst_84 = arith.constant 1.000000e+00 : f32
    %207 = vector.broadcast %cst_84 : f32 to vector<1x7xf32>
    %cst_85 = arith.constant dense<0.000000e+00> : vector<1x8xf32>
    %208 = tpu.matmul %207, %204, %cst_85 {dimension_numbers = #tpu.dot_dimension_numbers<[1], [1], [0], [0], [0, 0, 1, 0], [], []>} : vector<1x7xf32>, vector<8x7xf32>, vector<1x8xf32> -> vector<1x8xf32>
    %cst_86 = arith.constant dense<0.000000e+00> : vector<8x8xf32>
    %209 = tpu.matmul %201, %201, %cst_86 {dimension_numbers = #tpu.dot_dimension_numbers<[1], [1], [0], [0], [0, 0, 1, 0], [], []>} : vector<8x7xf32>, vector<8x7xf32>, vector<8x8xf32> -> vector<8x8xf32>
    %cst_87 = arith.constant dense<0.000000e+00> : vector<8x16xf32>
    %210 = tpu.matmul %201, %202, %cst_87 {dimension_numbers = #tpu.dot_dimension_numbers<[1], [0], [0], [1], [0, 0, 1, 1], [], []>} : vector<8x7xf32>, vector<7x16xf32>, vector<8x16xf32> -> vector<8x16xf32>
    %211 = vector.broadcast %206 : vector<8x1xf32> to vector<8x8xf32>
    %212 = vector.broadcast %208 : vector<1x8xf32> to vector<8x8xf32>
    %213 = arith.addf %211, %212 : vector<8x8xf32>
    %cst_88 = arith.constant 2.000000e+00 : f32
    %214 = vector.broadcast %cst_88 : f32 to vector<8x8xf32>
    %215 = arith.mulf %214, %209 : vector<8x8xf32>
    %216 = arith.subf %213, %215 : vector<8x8xf32>
    %cst_89 = arith.constant 0.000000e+00 : f32
    %217 = vector.broadcast %cst_89 : f32 to vector<8x8xf32>
    %218 = arith.maximumf %216, %217 : vector<8x8xf32>
    %219 = vector.broadcast %206 : vector<8x1xf32> to vector<8x16xf32>
    %220 = vector.broadcast %203 : vector<1x16xf32> to vector<8x16xf32>
    %221 = arith.addf %219, %220 : vector<8x16xf32>
    %cst_90 = arith.constant 2.000000e+00 : f32
    %222 = vector.broadcast %cst_90 : f32 to vector<8x16xf32>
    %223 = arith.mulf %222, %210 : vector<8x16xf32>
    %224 = arith.subf %221, %223 : vector<8x16xf32>
    %cst_91 = arith.constant 0.000000e+00 : f32
    %225 = vector.broadcast %cst_91 : f32 to vector<8x16xf32>
    %226 = arith.maximumf %224, %225 : vector<8x16xf32>
    %227 = math.sqrt %218 : vector<8x8xf32>
    %cst_92 = arith.constant 2.23606801 : f32
    %228 = vector.broadcast %cst_92 : f32 to vector<8x8xf32>
    %229 = arith.mulf %228, %227 : vector<8x8xf32>
    %cst_93 = arith.constant 1.000000e+00 : f32
    %230 = vector.broadcast %cst_93 : f32 to vector<8x8xf32>
    %231 = arith.addf %230, %229 : vector<8x8xf32>
    %cst_94 = arith.constant 1.66666663 : f32
    %232 = vector.broadcast %cst_94 : f32 to vector<8x8xf32>
    %233 = arith.mulf %232, %218 : vector<8x8xf32>
    %234 = arith.addf %231, %233 : vector<8x8xf32>
    %cst_95 = arith.constant -2.23606801 : f32
    %235 = vector.broadcast %cst_95 : f32 to vector<8x8xf32>
    %236 = arith.mulf %235, %227 : vector<8x8xf32>
    %237 = math.exp %236 : vector<8x8xf32>
    %238 = arith.mulf %234, %237 : vector<8x8xf32>
    %239 = vector.broadcast %199 : f32 to vector<8x8xf32>
    %240 = arith.mulf %239, %238 : vector<8x8xf32>
    %241 = math.sqrt %226 : vector<8x16xf32>
    %cst_96 = arith.constant 2.23606801 : f32
    %242 = vector.broadcast %cst_96 : f32 to vector<8x16xf32>
    %243 = arith.mulf %242, %241 : vector<8x16xf32>
    %cst_97 = arith.constant 1.000000e+00 : f32
    %244 = vector.broadcast %cst_97 : f32 to vector<8x16xf32>
    %245 = arith.addf %244, %243 : vector<8x16xf32>
    %cst_98 = arith.constant 1.66666663 : f32
    %246 = vector.broadcast %cst_98 : f32 to vector<8x16xf32>
    %247 = arith.mulf %246, %226 : vector<8x16xf32>
    %248 = arith.addf %245, %247 : vector<8x16xf32>
    %cst_99 = arith.constant -2.23606801 : f32
    %249 = vector.broadcast %cst_99 : f32 to vector<8x16xf32>
    %250 = arith.mulf %249, %241 : vector<8x16xf32>
    %251 = math.exp %250 : vector<8x16xf32>
    %252 = arith.mulf %248, %251 : vector<8x16xf32>
    %253 = vector.broadcast %199 : f32 to vector<8x16xf32>
    %254 = arith.mulf %253, %252 : vector<8x16xf32>
    %cst_100 = arith.constant dense<0.000000e+00> : vector<8x16xf32>
    %255 = tpu.matmul %254, %197, %cst_100 {dimension_numbers = #tpu.dot_dimension_numbers<[1], [0], [0], [1], [0, 0, 1, 1], [], []>} : vector<8x16xf32>, vector<16x16xf32>, vector<8x16xf32> -> vector<8x16xf32>
    %cst_101 = arith.constant dense<0.000000e+00> : vector<8x8xf32>
    %256 = tpu.matmul %255, %254, %cst_101 {dimension_numbers = #tpu.dot_dimension_numbers<[1], [1], [0], [0], [0, 0, 1, 0], [], []>} : vector<8x16xf32>, vector<8x16xf32>, vector<8x8xf32> -> vector<8x8xf32>
    %257 = arith.addf %240, %256 : vector<8x8xf32>
    %cst_102 = arith.constant 9.99999971E-10 : f32
    %258 = vector.broadcast %cst_102 : f32 to vector<8x8xf32>
    %259 = arith.mulf %258, %137 : vector<8x8xf32>
    %260 = arith.addf %257, %259 : vector<8x8xf32>
    %c1_103 = arith.constant 1 : index
    %c0_104 = arith.constant 0 : index
    %c0_105 = arith.constant 0 : index
    %261 = vector.load %arg11[%c1_103, %c0_104, %c0_105] : memref<3x8x8xf32, #tpu.memory_space<vmem>>, vector<1x8x8xf32>
    %262 = vector.shape_cast %261 : vector<1x8x8xf32> to vector<8x8xf32>
    %263 = vector.shape_cast %260 : vector<8x8xf32> to vector<1x8x8xf32>
    tpu.vector_store %arg11[%c1_103, %c0_104, %c0_105], %263 {strides = array<i32>} : memref<3x8x8xf32, #tpu.memory_space<vmem>>, vector<1x8x8xf32>,
    %c0_106 = arith.constant 0 : index
    %c0_107 = arith.constant 0 : index
    %264 = vector.load %arg6[%c0_106, %c0_107] : memref<8x7xf32, #tpu.memory_space<vmem>>, vector<8x7xf32>
    %265 = tpu.iota {dimensions = array<i32: 1>} : vector<8x7xi32>
    %c6_i32_108 = arith.constant 6 : i32
    %266 = vector.broadcast %c6_i32_108 : i32 to vector<8x7xi32>
    %267 = arith.cmpi eq, %265, %266 : vector<8x7xi32>
    %268 = vector.shape_cast %123 : vector<8x1xf32> to vector<8x1xf32>
    %269 = vector.broadcast %268 : vector<8x1xf32> to vector<8x7xf32>
    %270 = arith.select %267, %269, %264 : vector<8x7xi1>, vector<8x7xf32>
    %c2_109 = arith.constant 2 : index
    %c0_110 = arith.constant 0 : index
    %c0_111 = arith.constant 0 : index
    %271 = vector.load %arg9[%c2_109, %c0_110, %c0_111] : memref<3x16x16xf32, #tpu.memory_space<vmem>>, vector<1x16x16xf32>
    %272 = vector.shape_cast %271 : vector<1x16x16xf32> to vector<16x16xf32>
    %c2_112 = arith.constant 2 : index
    %273 = memref.load %arg0[%c2_112] : memref<16xf32, #tpu.memory_space<smem>>
    %c5 = arith.constant 5 : index
    %274 = memref.load %arg0[%c5] : memref<16xf32, #tpu.memory_space<smem>>
    %275 = vector.broadcast %273 : f32 to vector<8x7xf32>
    %276 = arith.mulf %270, %275 : vector<8x7xf32>
    %c24_113 = arith.constant 24 : index
    %c0_114 = arith.constant 0 : index
    %277 = vector.load %arg8[%c24_113, %c0_114] : memref<32x16xf32, #tpu.memory_space<vmem>>, vector<7x16xf32>
    %c31 = arith.constant 31 : index
    %c0_115 = arith.constant 0 : index
    %278 = vector.load %arg8[%c31, %c0_115] : memref<32x16xf32, #tpu.memory_space<vmem>>, vector<1x16xf32>
    %279 = arith.mulf %276, %276 : vector<8x7xf32>
    %cst_116 = arith.constant dense<0.000000e+00> : vector<8xf32>
    %280 = vector.multi_reduction <add>, %279, %cst_116 [1] : vector<8x7xf32> to vector<8xf32>
    %281 = vector.shape_cast %280 : vector<8xf32> to vector<8x1xf32>
    %cst_117 = arith.constant 1.000000e+00 : f32
    %282 = vector.broadcast %cst_117 : f32 to vector<1x7xf32>
    %cst_118 = arith.constant dense<0.000000e+00> : vector<1x8xf32>
    %283 = tpu.matmul %282, %279, %cst_118 {dimension_numbers = #tpu.dot_dimension_numbers<[1], [1], [0], [0], [0, 0, 1, 0], [], []>} : vector<1x7xf32>, vector<8x7xf32>, vector<1x8xf32> -> vector<1x8xf32>
    %cst_119 = arith.constant dense<0.000000e+00> : vector<8x8xf32>
    %284 = tpu.matmul %276, %276, %cst_119 {dimension_numbers = #tpu.dot_dimension_numbers<[1], [1], [0], [0], [0, 0, 1, 0], [], []>} : vector<8x7xf32>, vector<8x7xf32>, vector<8x8xf32> -> vector<8x8xf32>
    %cst_120 = arith.constant dense<0.000000e+00> : vector<8x16xf32>
    %285 = tpu.matmul %276, %277, %cst_120 {dimension_numbers = #tpu.dot_dimension_numbers<[1], [0], [0], [1], [0, 0, 1, 1], [], []>} : vector<8x7xf32>, vector<7x16xf32>, vector<8x16xf32> -> vector<8x16xf32>
    %286 = vector.broadcast %281 : vector<8x1xf32> to vector<8x8xf32>
    %287 = vector.broadcast %283 : vector<1x8xf32> to vector<8x8xf32>
    %288 = arith.addf %286, %287 : vector<8x8xf32>
    %cst_121 = arith.constant 2.000000e+00 : f32
    %289 = vector.broadcast %cst_121 : f32 to vector<8x8xf32>
    %290 = arith.mulf %289, %284 : vector<8x8xf32>
    %291 = arith.subf %288, %290 : vector<8x8xf32>
    %cst_122 = arith.constant 0.000000e+00 : f32
    %292 = vector.broadcast %cst_122 : f32 to vector<8x8xf32>
    %293 = arith.maximumf %291, %292 : vector<8x8xf32>
    %294 = vector.broadcast %281 : vector<8x1xf32> to vector<8x16xf32>
    %295 = vector.broadcast %278 : vector<1x16xf32> to vector<8x16xf32>
    %296 = arith.addf %294, %295 : vector<8x16xf32>
    %cst_123 = arith.constant 2.000000e+00 : f32
    %297 = vector.broadcast %cst_123 : f32 to vector<8x16xf32>
    %298 = arith.mulf %297, %285 : vector<8x16xf32>
    %299 = arith.subf %296, %298 : vector<8x16xf32>
    %cst_124 = arith.constant 0.000000e+00 : f32
    %300 = vector.broadcast %cst_124 : f32 to vector<8x16xf32>
    %301 = arith.maximumf %299, %300 : vector<8x16xf32>
    %302 = math.sqrt %293 : vector<8x8xf32>
    %cst_125 = arith.constant 2.23606801 : f32
    %303 = vector.broadcast %cst_125 : f32 to vector<8x8xf32>
    %304 = arith.mulf %303, %302 : vector<8x8xf32>
    %cst_126 = arith.constant 1.000000e+00 : f32
    %305 = vector.broadcast %cst_126 : f32 to vector<8x8xf32>
    %306 = arith.addf %305, %304 : vector<8x8xf32>
    %cst_127 = arith.constant 1.66666663 : f32
    %307 = vector.broadcast %cst_127 : f32 to vector<8x8xf32>
    %308 = arith.mulf %307, %293 : vector<8x8xf32>
    %309 = arith.addf %306, %308 : vector<8x8xf32>
    %cst_128 = arith.constant -2.23606801 : f32
    %310 = vector.broadcast %cst_128 : f32 to vector<8x8xf32>
    %311 = arith.mulf %310, %302 : vector<8x8xf32>
    %312 = math.exp %311 : vector<8x8xf32>
    %313 = arith.mulf %309, %312 : vector<8x8xf32>
    %314 = vector.broadcast %274 : f32 to vector<8x8xf32>
    %315 = arith.mulf %314, %313 : vector<8x8xf32>
    %316 = math.sqrt %301 : vector<8x16xf32>
    %cst_129 = arith.constant 2.23606801 : f32
    %317 = vector.broadcast %cst_129 : f32 to vector<8x16xf32>
    %318 = arith.mulf %317, %316 : vector<8x16xf32>
    %cst_130 = arith.constant 1.000000e+00 : f32
    %319 = vector.broadcast %cst_130 : f32 to vector<8x16xf32>
    %320 = arith.addf %319, %318 : vector<8x16xf32>
    %cst_131 = arith.constant 1.66666663 : f32
    %321 = vector.broadcast %cst_131 : f32 to vector<8x16xf32>
    %322 = arith.mulf %321, %301 : vector<8x16xf32>
    %323 = arith.addf %320, %322 : vector<8x16xf32>
    %cst_132 = arith.constant -2.23606801 : f32
    %324 = vector.broadcast %cst_132 : f32 to vector<8x16xf32>
    %325 = arith.mulf %324, %316 : vector<8x16xf32>
    %326 = math.exp %325 : vector<8x16xf32>
    %327 = arith.mulf %323, %326 : vector<8x16xf32>
    %328 = vector.broadcast %274 : f32 to vector<8x16xf32>
    %329 = arith.mulf %328, %327 : vector<8x16xf32>
    %cst_133 = arith.constant dense<0.000000e+00> : vector<8x16xf32>
    %330 = tpu.matmul %329, %272, %cst_133 {dimension_numbers = #tpu.dot_dimension_numbers<[1], [0], [0], [1], [0, 0, 1, 1], [], []>} : vector<8x16xf32>, vector<16x16xf32>, vector<8x16xf32> -> vector<8x16xf32>
    %cst_134 = arith.constant dense<0.000000e+00> : vector<8x8xf32>
    %331 = tpu.matmul %330, %329, %cst_134 {dimension_numbers = #tpu.dot_dimension_numbers<[1], [1], [0], [0], [0, 0, 1, 0], [], []>} : vector<8x16xf32>, vector<8x16xf32>, vector<8x8xf32> -> vector<8x8xf32>
    %332 = arith.addf %315, %331 : vector<8x8xf32>
    %cst_135 = arith.constant 9.99999971E-10 : f32
    %333 = vector.broadcast %cst_135 : f32 to vector<8x8xf32>
    %334 = arith.mulf %333, %137 : vector<8x8xf32>
    %335 = arith.addf %332, %334 : vector<8x8xf32>
    %c2_136 = arith.constant 2 : index
    %c0_137 = arith.constant 0 : index
    %c0_138 = arith.constant 0 : index
    %336 = vector.load %arg11[%c2_136, %c0_137, %c0_138] : memref<3x8x8xf32, #tpu.memory_space<vmem>>, vector<1x8x8xf32>
    %337 = vector.shape_cast %336 : vector<1x8x8xf32> to vector<8x8xf32>
    %338 = vector.shape_cast %335 : vector<8x8xf32> to vector<1x8x8xf32>
    tpu.vector_store %arg11[%c2_136, %c0_137, %c0_138], %338 {strides = array<i32>} : memref<3x8x8xf32, #tpu.memory_space<vmem>>, vector<1x8x8xf32>,
    return
  }
}

</mosaic_0001>

<llo_original>
// kernel: state_space_svgp_forward.1
$region0: #{state_space_svgp_forward.1}
  #allocation0 [shape = 'u32[]', space=smem, size = 0x4, offset = 0x4, fixed_abs, tag = 'smem constant byte address 0x4 - core index']
  #allocation1 [shape = 'u32[144,128]{1,0:T(1,128)}', space=vmem, size = 0x12000, scoped, tag = 'internal scratch']
  %s0 = inlined_call_operand.vmem [shape: f32[16], index: 0, kind: input, shape index: {}]
  %s1 = inlined_call_operand.vmem [shape: f32[8,16], index: 1, kind: input, shape index: {}]
  %s2 = inlined_call_operand.vmem [shape: f32[8,12], index: 2, kind: input, shape index: {}]
  %s3 = inlined_call_operand.vmem [shape: f32[8,12], index: 3, kind: input, shape index: {}]
  %s4 = inlined_call_operand.vmem [shape: f32[8,8], index: 4, kind: input, shape index: {}]
  %s5 = inlined_call_operand.vmem [shape: f32[8,7], index: 5, kind: input, shape index: {}]
  %s6 = inlined_call_operand.vmem [shape: f32[8,7], index: 6, kind: input, shape index: {}]
  %s7 = inlined_call_operand.vmem [shape: f32[56,32], index: 7, kind: input, shape index: {}]
  %s8 = inlined_call_operand.vmem [shape: f32[32,16], index: 8, kind: input, shape index: {}]
  %s9 = inlined_call_operand.vmem [shape: f32[3,16,16], index: 9, kind: input, shape index: {}]
  %s10 = inlined_call_operand.vmem [shape: f32[3,8,1], index: 10, kind: output, shape index: {0}]
  %s11 = inlined_call_operand.vmem [shape: f32[3,8,8], index: 11, kind: output, shape index: {1}]
  %12 = xla_tuple %s10, %s11
  %s13 = sld [smem:[#allocation0]]
  $region62: #{state_space_svgp_forward.1} parent=0
    _
  %s15 = ssub.s32 1, %s13
  %s16 = scalar_select 0, %s15, %s13
  $region1: #{state_space_svgp_forward.1} parent=0
    #allocation2 [shape = 'u8[512]{0}', space=smem, size = 0x200, scoped, tag = 'input window, operand 0, single buffered']
    #allocation3 [shape = 's32[1]{0}', space=sflag, size = 0x4, scoped, tag = 'scoped memory for state_space_svgp_forward.1']
    %17 = vsyncpa [#allocation3], 0
    // Predicated region
    $region2: #{state_space_svgp_forward.1} parent=1 // pred_check
      _
    $region3: #{state_space_svgp_forward.1} parent=1 // pred_check_branch
      %19 = sbr.rel (0) target = $region5
    $region4: #{state_space_svgp_forward.1} parent=1 // pred_region
      %s21 = ssub.s32 16, 16
      %22 = vsyncadd [#allocation3], %s21
      %s24 = sshll.u32 %s0, 4
      %s25 = int_to_ptr.vmem [resolvable:$true] %s24
      %27 = dma.vmem_to_smem %s25, 16, [#allocation2], [#allocation3]
    $region5: #{state_space_svgp_forward.1} parent=1 // pred_fallthru
      _
    // Predicated region
    $region6: #{state_space_svgp_forward.1} parent=1 // pred_check
      _
    $region7: #{state_space_svgp_forward.1} parent=1 // pred_check_branch
      %29 = sbr.rel (0) target = $region9
    $region8: #{state_space_svgp_forward.1} parent=1 // pred_region
      _
    $region9: #{state_space_svgp_forward.1} parent=1 // pred_fallthru
      _
    // Predicated region
    $region10: #{state_space_svgp_forward.1} parent=1 // pred_check
      _
    $region11: #{state_space_svgp_forward.1} parent=1 // pred_check_branch
      %31 = sbr.rel (0) target = $region13
    $region12: #{state_space_svgp_forward.1} parent=1 // pred_region
      _
    $region13: #{state_space_svgp_forward.1} parent=1 // pred_fallthru
      _
    // Predicated region
    $region14: #{state_space_svgp_forward.1} parent=1 // pred_check
      _
    $region15: #{state_space_svgp_forward.1} parent=1 // pred_check_branch
      %33 = sbr.rel (0) target = $region17
    $region16: #{state_space_svgp_forward.1} parent=1 // pred_region
      _
    $region17: #{state_space_svgp_forward.1} parent=1 // pred_fallthru
      _
    // Predicated region
    $region18: #{state_space_svgp_forward.1} parent=1 // pred_check
      _
    $region19: #{state_space_svgp_forward.1} parent=1 // pred_check_branch
      %35 = sbr.rel (0) target = $region21
    $region20: #{state_space_svgp_forward.1} parent=1 // pred_region
      _
    $region21: #{state_space_svgp_forward.1} parent=1 // pred_fallthru
      _
    // Predicated region
    $region22: #{state_space_svgp_forward.1} parent=1 // pred_check
      _
    $region23: #{state_space_svgp_forward.1} parent=1 // pred_check_branch
      %37 = sbr.rel (0) target = $region25
    $region24: #{state_space_svgp_forward.1} parent=1 // pred_region
      _
    $region25: #{state_space_svgp_forward.1} parent=1 // pred_fallthru
      _
    // Predicated region
    $region26: #{state_space_svgp_forward.1} parent=1 // pred_check
      _
    $region27: #{state_space_svgp_forward.1} parent=1 // pred_check_branch
      %39 = sbr.rel (0) target = $region29
    $region28: #{state_space_svgp_forward.1} parent=1 // pred_region
      _
    $region29: #{state_space_svgp_forward.1} parent=1 // pred_fallthru
      _
    // Predicated region
    $region30: #{state_space_svgp_forward.1} parent=1 // pred_check
      _
    $region31: #{state_space_svgp_forward.1} parent=1 // pred_check_branch
      %41 = sbr.rel (0) target = $region33
    $region32: #{state_space_svgp_forward.1} parent=1 // pred_region
      _
    $region33: #{state_space_svgp_forward.1} parent=1 // pred_fallthru
      _
    // Predicated region
    $region34: #{state_space_svgp_forward.1} parent=1 // pred_check
      _
    $region35: #{state_space_svgp_forward.1} parent=1 // pred_check_branch
      %43 = sbr.rel (0) target = $region37
    $region36: #{state_space_svgp_forward.1} parent=1 // pred_region
      _
    $region37: #{state_space_svgp_forward.1} parent=1 // pred_fallthru
      _
    // Predicated region
    $region38: #{state_space_svgp_forward.1} parent=1 // pred_check
      _
    $region39: #{state_space_svgp_forward.1} parent=1 // pred_check_branch
      %45 = sbr.rel (0) target = $region41
    $region40: #{state_space_svgp_forward.1} parent=1 // pred_region
      _
    $region41: #{state_space_svgp_forward.1} parent=1 // pred_fallthru
      _
    // Predicated region
    $region42: #{state_space_svgp_forward.1} parent=1 // pred_check
      _
    $region43: #{state_space_svgp_forward.1} parent=1 // pred_check_branch
      %47 = sbr.rel (0) target = $region45
    $region44: #{state_space_svgp_forward.1} parent=1 // pred_region
      %48 = dma.done [#allocation3], 16
    $region45: #{state_space_svgp_forward.1} parent=1 // pred_fallthru
      _
    %49 = sfence
    %v50 = vld [vmem:[%s7] sm:$0xff]
    %v51 = vld [vmem:[%s7 + $0x8] sm:$0xff]
    %v52 = vld [vmem:[%s7 + $0x10] sm:$0x1]
    %v53 = vld [vmem:[%s7 + $0x11] sm:$0x1]
    %v54 = vld [vmem:[%s1] sm:$0xff]
    %vm55 = vcmask 130048
    %v56 = vsel %vm55, %v54, 0.0
    %57 = vadd.xlane.f32.xlu0 %v56
    %v58 = vpop.xlane.xlu0 %57
    %v59 = vrcp.pop 16.0
    %v60 = vmul.f32 %v58, %v59
    %v61 = vsub.f32 %v54, %v60
    %v62 = vmul.f32 %v61, %v61
    %v63 = vsel %vm55, %v62, 0.0
    %64 = vadd.xlane.f32.xlu0 %v63
    %v65 = vpop.xlane.xlu0 %64
    %v66 = vmul.f32 %v65, %v59
    %v67 = vadd.f32 %v66, 1e-05
    %v68 = vrsqrt.pop %v67
    %v69 = vmul.f32 %v61, %v68
    %v70 = vlaneseq
    %v71 = vshrl.u32 %v70, 7
    %v72 = vsub.s32 0, %v71
    %v73 = vrot.slane %v52, %v72
    %v75 = vsel %vm55, %v69, 0
    %77 = vmatprep.subr.mxu0 0.0
    %78 = vmatpush1.msra.mxu0 %v50
    %79 = vmatprep.subr.mxu0 0.0
    %80 = vmatpush1.msra.mxu0 %v51
    %81 = vmatprep.subr.mxu0 0.0
    %82 = vmatpush1.msra.mxu0 0.0
    %83 = vmatprep.subr.mxu0 0.0
    %84 = vmatpush1.msra.mxu0 0.0
    %85 = vmatprep.subr.mxu0 0.0
    %86 = vmatpush1.msra.mxu0 0.0
    %87 = vmatprep.subr.mxu0 0.0
    %88 = vmatpush1.msra.mxu0 0.0
    %89 = vmatprep.subr.mxu0 0.0
    %90 = vmatpush1.msra.mxu0 0.0
    %91 = vmatprep.subr.mxu0 0.0
    %92 = vmatpush1.msra.mxu0 0.0
    %93 = vmatprep.subr.mxu0 0.0
    %94 = vmatpush1.msra.mxu0 0.0
    %95 = vmatprep.subr.mxu0 0.0
    %96 = vmatpush1.msra.mxu0 0.0
    %97 = vmatprep.subr.mxu0 0.0
    %98 = vmatpush1.msra.mxu0 0.0
    %99 = vmatprep.subr.mxu0 0.0
    %100 = vmatpush1.msra.mxu0 0.0
    %101 = vmatprep.subr.mxu0 0.0
    %102 = vmatpush1.msra.mxu0 0.0
    %103 = vmatprep.subr.mxu0 0.0
    %104 = vmatpush1.msra.mxu0 0.0
    %105 = vmatprep.subr.mxu0 0.0
    %106 = vmatpush1.msra.mxu0 0.0
    %107 = vmatprep.subr.mxu0 0.0
    %108 = vmatpush1.msra.mxu0 0.0
    %109 = vmatprep.subr.mxu0 0.0
    %110 = vmatpush1.msra.mxu0 0.0
    %111 = vmatprep.subr.mxu0 0.0
    %112 = vmatpush1.msra.mxu0 0.0
    %113 = vmatprep.subr.mxu0 0.0
    %114 = vmatpush1.msra.mxu0 0.0
    %115 = vmatprep.subr.mxu0 0.0
    %116 = vmatpush1.msra.mxu0 0.0
    %117 = vmatprep.subr.mxu0 0.0
    %118 = vmatpush1.msra.mxu0 0.0
    %119 = vmatprep.subr.mxu0 0.0
    %120 = vmatpush1.msra.mxu0 0.0
    %121 = vmatprep.subr.mxu0 0.0
    %122 = vmatpush1.msra.mxu0 0.0
    %123 = vmatprep.subr.mxu0 0.0
    %124 = vmatpush1.msra.mxu0 0.0
    %125 = vmatprep.subr.mxu0 0.0
    %126 = vmatpush1.msra.mxu0 0.0
    %127 = vmatprep.subr.mxu0 0.0
    %128 = vmatpush1.msra.mxu0 0.0
    %129 = vmatprep.subr.mxu0 0.0
    %130 = vmatpush1.msra.mxu0 0.0
    %131 = vmatprep.subr.mxu0 0.0
    %132 = vmatpush1.msra.mxu0 0.0
    %133 = vmatprep.subr.mxu0 0.0
    %134 = vmatpush1.msra.mxu0 0.0
    %135 = vmatprep.subr.mxu0 0.0
    %136 = vmatpush1.msra.mxu0 0.0
    %137 = vmatprep.subr.mxu0 0.0
    %138 = vmatpush1.msra.mxu0 0.0
    %139 = vmatprep.subr.mxu0 0.0
    %140 = vmatpush1.msra.mxu0 0.0
    %141 = vmatprep.mubr.f32.mxu0 0.0
    %142 = vmatmul.mubr.f32.gmra.mrb[0].mxu0 %v75
    %v143 = vpop.f32.mrb[0].mxu0
    %v144 = vadd.f32 %v73, %v143
    %v145 = vpop.f32.mrb[0].mxu0
    %146 = vdwg.mxu0
    %s147 = sld [smem:[#allocation2 + $0x6]]
    %v148 = vmax.f32 %v144, 0.0
    %v149 = vlaneseq
    %v150 = vshrl.u32 %v149, 7
    %v151 = vsub.s32 0, %v150
    %v152 = vrot.slane %v53, %v151
    %v153 = vmul.f32 %v148, %v152
    %vm154 = vcmask 261120
    %v155 = vsel %vm154, %v153, 0.0
    %156 = vadd.xlane.f32.xlu0 %v155
    %v157 = vpop.xlane.xlu0 %156
    %v158 = vstv %s147
    %v159 = vadd.f32 %v157, %v158
    %s160 = sld [smem:[#allocation2 + $0x7]]
    %v161 = vld [vmem:[%s2] sm:$0xff]
    %v162 = vld [vmem:[%s7 + $0x18] sm:$0xff]
    %v163 = vld [vmem:[%s7 + $0x20] sm:$0xf]
    %v164 = vld [vmem:[%s7 + $0x24] sm:$0x1]
    %v165 = vld [vmem:[%s7 + $0x25] sm:$0x1]
    %v166 = vld [vmem:[%s7 + $0x26] sm:$0x1]
    %vm167 = vcmask 97280
    %v168 = vsel %vm167, %v161, 0.0
    %169 = vadd.xlane.f32.xlu0 %v168
    %v170 = vpop.xlane.xlu0 %169
    %v171 = vadd.f32 %v170, %v159
    %v172 = vmul.f32 %v171, 0.07692308
    %v173 = vsub.f32 %v161, %v172
    %v174 = vmul.f32 %v173, %v173
    %v175 = vsel %vm167, %v174, 0.0
    %176 = vadd.xlane.f32.xlu0 %v175
    %v177 = vpop.xlane.xlu0 %176
    %v178 = vsub.f32 %v159, %v172
    %v179 = vmul.f32 %v178, %v178
    %v180 = vadd.f32 %v177, %v179
    %v181 = vmul.f32 %v180, 0.07692308
    %v182 = vadd.f32 %v181, 1e-05
    %v183 = vrsqrt.pop %v182
    %v184 = vmul.f32 %v173, %v183
    %v185 = vmul.f32 %v178, %v183
    %v186 = vlaneseq
    %v187 = vshrl.u32 %v186, 7
    %v188 = vsub.s32 0, %v187
    %v189 = vrot.slane %v166, %v188
    %v190 = vmul.f32 %v185, %v189
    %v192 = vsel %vm167, %v184, 0
    %vm194 = vcmask 1043456
    %v196 = vsel %vm194, %v163, 0
    %198 = vmatprep.subr.mxu0 0.0
    %199 = vmatpush1.msra.mxu0 %v162
    %200 = vmatprep.subr.mxu0 0.0
    %201 = vmatpush1.msra.mxu0 %v196
    %202 = vmatprep.subr.mxu0 0.0
    %203 = vmatpush1.msra.mxu0 0.0
    %204 = vmatprep.subr.mxu0 0.0
    %205 = vmatpush1.msra.mxu0 0.0
    %206 = vmatprep.subr.mxu0 0.0
    %207 = vmatpush1.msra.mxu0 0.0
    %208 = vmatprep.subr.mxu0 0.0
    %209 = vmatpush1.msra.mxu0 0.0
    %210 = vmatprep.subr.mxu0 0.0
    %211 = vmatpush1.msra.mxu0 0.0
    %212 = vmatprep.subr.mxu0 0.0
    %213 = vmatpush1.msra.mxu0 0.0
    %214 = vmatprep.subr.mxu0 0.0
    %215 = vmatpush1.msra.mxu0 0.0
    %216 = vmatprep.subr.mxu0 0.0
    %217 = vmatpush1.msra.mxu0 0.0
    %218 = vmatprep.subr.mxu0 0.0
    %219 = vmatpush1.msra.mxu0 0.0
    %220 = vmatprep.subr.mxu0 0.0
    %221 = vmatpush1.msra.mxu0 0.0
    %222 = vmatprep.subr.mxu0 0.0
    %223 = vmatpush1.msra.mxu0 0.0
    %224 = vmatprep.subr.mxu0 0.0
    %225 = vmatpush1.msra.mxu0 0.0
    %226 = vmatprep.subr.mxu0 0.0
    %227 = vmatpush1.msra.mxu0 0.0
    %228 = vmatprep.subr.mxu0 0.0
    %229 = vmatpush1.msra.mxu0 0.0
    %230 = vmatprep.subr.mxu0 0.0
    %231 = vmatpush1.msra.mxu0 0.0
    %232 = vmatprep.subr.mxu0 0.0
    %233 = vmatpush1.msra.mxu0 0.0
    %234 = vmatprep.subr.mxu0 0.0
    %235 = vmatpush1.msra.mxu0 0.0
    %236 = vmatprep.subr.mxu0 0.0
    %237 = vmatpush1.msra.mxu0 0.0
    %238 = vmatprep.subr.mxu0 0.0
    %239 = vmatpush1.msra.mxu0 0.0
    %240 = vmatprep.subr.mxu0 0.0
    %241 = vmatpush1.msra.mxu0 0.0
    %242 = vmatprep.subr.mxu0 0.0
    %243 = vmatpush1.msra.mxu0 0.0
    %244 = vmatprep.subr.mxu0 0.0
    %245 = vmatpush1.msra.mxu0 0.0
    %246 = vmatprep.subr.mxu0 0.0
    %247 = vmatpush1.msra.mxu0 0.0
    %248 = vmatprep.subr.mxu0 0.0
    %249 = vmatpush1.msra.mxu0 0.0
    %250 = vmatprep.subr.mxu0 0.0
    %251 = vmatpush1.msra.mxu0 0.0
    %252 = vmatprep.subr.mxu0 0.0
    %253 = vmatpush1.msra.mxu0 0.0
    %254 = vmatprep.subr.mxu0 0.0
    %255 = vmatpush1.msra.mxu0 0.0
    %256 = vmatprep.subr.mxu0 0.0
    %257 = vmatpush1.msra.mxu0 0.0
    %258 = vmatprep.subr.mxu0 0.0
    %259 = vmatpush1.msra.mxu0 0.0
    %260 = vmatprep.subr.mxu0 0.0
    %261 = vmatpush1.msra.mxu0 0.0
    %262 = vmatprep.mubr.f32.mxu0 0.0
    %263 = vmatmul.mubr.f32.gmra.mrb[0].mxu0 %v192
    %v264 = vpop.f32.mrb[0].mxu0
    %v265 = vadd.f32 %v190, %v264
    %v266 = vpop.f32.mrb[0].mxu0
    %267 = vdwg.mxu0
    %v268 = vlaneseq
    %v269 = vshrl.u32 %v268, 7
    %v270 = vsub.s32 0, %v269
    %v271 = vrot.slane %v164, %v270
    %v272 = vadd.f32 %v265, %v271
    %v273 = vmax.f32 %v272, 0.0
    %v274 = vlaneseq
    %v275 = vshrl.u32 %v274, 7
    %v276 = vsub.s32 0, %v275
    %v277 = vrot.slane %v165, %v276
    %v278 = vmul.f32 %v273, %v277
    %v279 = vsel %vm154, %v278, 0.0
    %280 = vadd.xlane.f32.xlu0 %v279
    %v281 = vpop.xlane.xlu0 %280
    %v282 = vstv %s160
    %v283 = vadd.f32 %v281, %v282
    %s284 = sld [smem:[#allocation2 + $0x8]]
    %v285 = vld [vmem:[%s3] sm:$0xff]
    %v286 = vld [vmem:[%s7 + $0x28] sm:$0xff]
    %v287 = vld [vmem:[%s7 + $0x30] sm:$0xf]
    %v288 = vld [vmem:[%s7 + $0x34] sm:$0x1]
    %v289 = vld [vmem:[%s7 + $0x35] sm:$0x1]
    %v290 = vld [vmem:[%s7 + $0x36] sm:$0x1]
    %v291 = vsel %vm167, %v285, 0.0
    %292 = vadd.xlane.f32.xlu0 %v291
    %v293 = vpop.xlane.xlu0 %292
    %v294 = vadd.f32 %v293, %v283
    %v295 = vmul.f32 %v294, 0.07692308
    %v296 = vsub.f32 %v285, %v295
    %v297 = vmul.f32 %v296, %v296
    %v298 = vsel %vm167, %v297, 0.0
    %299 = vadd.xlane.f32.xlu0 %v298
    %v300 = vpop.xlane.xlu0 %299
    %v301 = vsub.f32 %v283, %v295
    %v302 = vmul.f32 %v301, %v301
    %v303 = vadd.f32 %v300, %v302
    %v304 = vmul.f32 %v303, 0.07692308
    %v305 = vadd.f32 %v304, 1e-05
    %v306 = vrsqrt.pop %v305
    %v307 = vmul.f32 %v296, %v306
    %v308 = vmul.f32 %v301, %v306
    %v309 = vlaneseq
    %v310 = vshrl.u32 %v309, 7
    %v311 = vsub.s32 0, %v310
    %v312 = vrot.slane %v290, %v311
    %v313 = vmul.f32 %v308, %v312
    %v315 = vsel %vm167, %v307, 0
    %v318 = vsel %vm194, %v287, 0
    %320 = vmatprep.subr.mxu0 0.0
    %321 = vmatpush1.msra.mxu0 %v286
    %322 = vmatprep.subr.mxu0 0.0
    %323 = vmatpush1.msra.mxu0 %v318
    %324 = vmatprep.subr.mxu0 0.0
    %325 = vmatpush1.msra.mxu0 0.0
    %326 = vmatprep.subr.mxu0 0.0
    %327 = vmatpush1.msra.mxu0 0.0
    %328 = vmatprep.subr.mxu0 0.0
    %329 = vmatpush1.msra.mxu0 0.0
    %330 = vmatprep.subr.mxu0 0.0
    %331 = vmatpush1.msra.mxu0 0.0
    %332 = vmatprep.subr.mxu0 0.0
    %333 = vmatpush1.msra.mxu0 0.0
    %334 = vmatprep.subr.mxu0 0.0
    %335 = vmatpush1.msra.mxu0 0.0
    %336 = vmatprep.subr.mxu0 0.0
    %337 = vmatpush1.msra.mxu0 0.0
    %338 = vmatprep.subr.mxu0 0.0
    %339 = vmatpush1.msra.mxu0 0.0
    %340 = vmatprep.subr.mxu0 0.0
    %341 = vmatpush1.msra.mxu0 0.0
    %342 = vmatprep.subr.mxu0 0.0
    %343 = vmatpush1.msra.mxu0 0.0
    %344 = vmatprep.subr.mxu0 0.0
    %345 = vmatpush1.msra.mxu0 0.0
    %346 = vmatprep.subr.mxu0 0.0
    %347 = vmatpush1.msra.mxu0 0.0
    %348 = vmatprep.subr.mxu0 0.0
    %349 = vmatpush1.msra.mxu0 0.0
    %350 = vmatprep.subr.mxu0 0.0
    %351 = vmatpush1.msra.mxu0 0.0
    %352 = vmatprep.subr.mxu0 0.0
    %353 = vmatpush1.msra.mxu0 0.0
    %354 = vmatprep.subr.mxu0 0.0
    %355 = vmatpush1.msra.mxu0 0.0
    %356 = vmatprep.subr.mxu0 0.0
    %357 = vmatpush1.msra.mxu0 0.0
    %358 = vmatprep.subr.mxu0 0.0
    %359 = vmatpush1.msra.mxu0 0.0
    %360 = vmatprep.subr.mxu0 0.0
    %361 = vmatpush1.msra.mxu0 0.0
    %362 = vmatprep.subr.mxu0 0.0
    %363 = vmatpush1.msra.mxu0 0.0
    %364 = vmatprep.subr.mxu0 0.0
    %365 = vmatpush1.msra.mxu0 0.0
    %366 = vmatprep.subr.mxu0 0.0
    %367 = vmatpush1.msra.mxu0 0.0
    %368 = vmatprep.subr.mxu0 0.0
    %369 = vmatpush1.msra.mxu0 0.0
    %370 = vmatprep.subr.mxu0 0.0
    %371 = vmatpush1.msra.mxu0 0.0
    %372 = vmatprep.subr.mxu0 0.0
    %373 = vmatpush1.msra.mxu0 0.0
    %374 = vmatprep.subr.mxu0 0.0
    %375 = vmatpush1.msra.mxu0 0.0
    %376 = vmatprep.subr.mxu0 0.0
    %377 = vmatpush1.msra.mxu0 0.0
    %378 = vmatprep.subr.mxu0 0.0
    %379 = vmatpush1.msra.mxu0 0.0
    %380 = vmatprep.subr.mxu0 0.0
    %381 = vmatpush1.msra.mxu0 0.0
    %382 = vmatprep.subr.mxu0 0.0
    %383 = vmatpush1.msra.mxu0 0.0
    %384 = vmatprep.mubr.f32.mxu0 0.0
    %385 = vmatmul.mubr.f32.gmra.mrb[0].mxu0 %v315
    %v386 = vpop.f32.mrb[0].mxu0
    %v387 = vadd.f32 %v313, %v386
    %v388 = vpop.f32.mrb[0].mxu0
    %389 = vdwg.mxu0
    %v390 = vlaneseq
    %v391 = vshrl.u32 %v390, 7
    %v392 = vsub.s32 0, %v391
    %v393 = vrot.slane %v288, %v392
    %v394 = vadd.f32 %v387, %v393
    %v395 = vmax.f32 %v394, 0.0
    %v396 = vlaneseq
    %v397 = vshrl.u32 %v396, 7
    %v398 = vsub.s32 0, %v397
    %v399 = vrot.slane %v289, %v398
    %v400 = vmul.f32 %v395, %v399
    %v401 = vsel %vm154, %v400, 0.0
    %402 = vadd.xlane.f32.xlu0 %v401
    %v403 = vpop.xlane.xlu0 %402
    %v404 = vstv %s284
    %v405 = vadd.f32 %v403, %v404
    %vm406 = vcmask 7168
    %407 = vst.msk [vmem:[%s10] sm:$0xff] %vm406, %v159
    %s408 = scalar_lea.vmem %s10, 8
    %409 = vst.msk [vmem:[%s408] sm:$0xff] %vm406, %v283
    %s410 = scalar_lea.vmem %s10, 16
    %411 = vst.msk [vmem:[%s410] sm:$0xff] %vm406, %v405
    %v412 = vlaneseq
    %v413 = vshrl.u32 %v412, 7
    %v414 = vlaneseq
    %v415 = vand.u32 %v414, 127
    %vm416 = vcmp.eq.s32.totalorder %v413, %v415
    %v417 = vsel %vm416, 1, 0
    %v418 = vcvt.s32.f32 %v417
    %v419 = vld [vmem:[%s4] sm:$0xff]
    %v420 = vld [vmem:[%s9] sm:$0xff]
    %v421 = vld [vmem:[%s9 + $0x8] sm:$0xff]
    %s422 = sld [smem:[#allocation2]]
    %s423 = sld [smem:[#allocation2 + $0x3]]
    %v424 = vstv %s422
    %v425 = vmul.f32 %v419, %v424
    %v426 = vld [vmem:[%s8] sm:$0xff]
    %v427 = vld [vmem:[%s8 + $0x8] sm:$0x1]
    %v428 = vmul.f32 %v425, %v425
    %vm429 = vcmask 64512
    %v430 = vsel %vm429, %v428, 0.0
    %431 = vadd.xlane.f32.xlu0 %v430
    %v432 = vpop.xlane.xlu0 %431
    %v434 = vsel %vm429, 1.0, 0
    %v437 = vsel %vm429, %v428, 0
    %439 = vmatprep.subr.mxu0 0.0
    %440 = vmatpush1.xpose.msra.mxu0 %v437
    %441 = vmatprep.subr.mxu0 0.0
    %442 = vmatpush1.xpose.msra.mxu0 0.0
    %443 = vmatprep.subr.mxu0 0.0
    %444 = vmatpush1.xpose.msra.mxu0 0.0
    %445 = vmatprep.subr.mxu0 0.0
    %446 = vmatpush1.xpose.msra.mxu0 0.0
    %447 = vmatprep.subr.mxu0 0.0
    %448 = vmatpush1.xpose.msra.mxu0 0.0
    %449 = vmatprep.subr.mxu0 0.0
    %450 = vmatpush1.xpose.msra.mxu0 0.0
    %451 = vmatprep.subr.mxu0 0.0
    %452 = vmatpush1.xpose.msra.mxu0 0.0
    %453 = vmatprep.subr.mxu0 0.0
    %454 = vmatpush1.xpose.msra.mxu0 0.0
    %455 = vmatprep.subr.mxu0 0.0
    %456 = vmatpush1.xpose.msra.mxu0 0.0
    %457 = vmatprep.subr.mxu0 0.0
    %458 = vmatpush1.xpose.msra.mxu0 0.0
    %459 = vmatprep.subr.mxu0 0.0
    %460 = vmatpush1.xpose.msra.mxu0 0.0
    %461 = vmatprep.subr.mxu0 0.0
    %462 = vmatpush1.xpose.msra.mxu0 0.0
    %463 = vmatprep.subr.mxu0 0.0
    %464 = vmatpush1.xpose.msra.mxu0 0.0
    %465 = vmatprep.subr.mxu0 0.0
    %466 = vmatpush1.xpose.msra.mxu0 0.0
    %467 = vmatprep.subr.mxu0 0.0
    %468 = vmatpush1.xpose.msra.mxu0 0.0
    %469 = vmatprep.subr.mxu0 0.0
    %470 = vmatpush1.xpose.msra.mxu0 0.0
    %471 = vmatprep.subr.mxu0 0.0
    %472 = vmatpush1.xpose.msra.mxu0 0.0
    %473 = vmatprep.subr.mxu0 0.0
    %474 = vmatpush1.xpose.msra.mxu0 0.0
    %475 = vmatprep.subr.mxu0 0.0
    %476 = vmatpush1.xpose.msra.mxu0 0.0
    %477 = vmatprep.subr.mxu0 0.0
    %478 = vmatpush1.xpose.msra.mxu0 0.0
    %479 = vmatprep.subr.mxu0 0.0
    %480 = vmatpush1.xpose.msra.mxu0 0.0
    %481 = vmatprep.subr.mxu0 0.0
    %482 = vmatpush1.xpose.msra.mxu0 0.0
    %483 = vmatprep.subr.mxu0 0.0
    %484 = vmatpush1.xpose.msra.mxu0 0.0
    %485 = vmatprep.subr.mxu0 0.0
    %486 = vmatpush1.xpose.msra.mxu0 0.0
    %487 = vmatprep.subr.mxu0 0.0
    %488 = vmatpush1.xpose.msra.mxu0 0.0
    %489 = vmatprep.subr.mxu0 0.0
    %490 = vmatpush1.xpose.msra.mxu0 0.0
    %491 = vmatprep.subr.mxu0 0.0
    %492 = vmatpush1.xpose.msra.mxu0 0.0
    %493 = vmatprep.subr.mxu0 0.0
    %494 = vmatpush1.xpose.msra.mxu0 0.0
    %495 = vmatprep.subr.mxu0 0.0
    %496 = vmatpush1.xpose.msra.mxu0 0.0
    %497 = vmatprep.subr.mxu0 0.0
    %498 = vmatpush1.xpose.msra.mxu0 0.0
    %499 = vmatprep.subr.mxu0 0.0
    %500 = vmatpush1.xpose.msra.mxu0 0.0
    %501 = vmatprep.subr.mxu0 0.0
    %502 = vmatpush1.xpose.msra.mxu0 0.0
    %503 = vmatprep.mubr.f32.mxu0 0.0
    %504 = vmatmul.mubr.f32.gmra.mrb[0].mxu0 %v434
    %v505 = vpop.f32.mrb[0].mxu0
    %v506 = vadd.f32 0.0, %v505
    %v507 = vpop.f32.mrb[0].mxu0
    %508 = vdwg.mxu0
    %v510 = vsel %vm429, %v425, 0
    %512 = vmatprep.subr.mxu0 0.0
    %513 = vmatpush1.xpose.msra.mxu0 %v510
    %514 = vmatprep.subr.mxu0 0.0
    %515 = vmatpush1.xpose.msra.mxu0 0.0
    %516 = vmatprep.subr.mxu0 0.0
    %517 = vmatpush1.xpose.msra.mxu0 0.0
    %518 = vmatprep.subr.mxu0 0.0
    %519 = vmatpush1.xpose.msra.mxu0 0.0
    %520 = vmatprep.subr.mxu0 0.0
    %521 = vmatpush1.xpose.msra.mxu0 0.0
    %522 = vmatprep.subr.mxu0 0.0
    %523 = vmatpush1.xpose.msra.mxu0 0.0
    %524 = vmatprep.subr.mxu0 0.0
    %525 = vmatpush1.xpose.msra.mxu0 0.0
    %526 = vmatprep.subr.mxu0 0.0
    %527 = vmatpush1.xpose.msra.mxu0 0.0
    %528 = vmatprep.subr.mxu0 0.0
    %529 = vmatpush1.xpose.msra.mxu0 0.0
    %530 = vmatprep.subr.mxu0 0.0
    %531 = vmatpush1.xpose.msra.mxu0 0.0
    %532 = vmatprep.subr.mxu0 0.0
    %533 = vmatpush1.xpose.msra.mxu0 0.0
    %534 = vmatprep.subr.mxu0 0.0
    %535 = vmatpush1.xpose.msra.mxu0 0.0
    %536 = vmatprep.subr.mxu0 0.0
    %537 = vmatpush1.xpose.msra.mxu0 0.0
    %538 = vmatprep.subr.mxu0 0.0
    %539 = vmatpush1.xpose.msra.mxu0 0.0
    %540 = vmatprep.subr.mxu0 0.0
    %541 = vmatpush1.xpose.msra.mxu0 0.0
    %542 = vmatprep.subr.mxu0 0.0
    %543 = vmatpush1.xpose.msra.mxu0 0.0
    %544 = vmatprep.subr.mxu0 0.0
    %545 = vmatpush1.xpose.msra.mxu0 0.0
    %546 = vmatprep.subr.mxu0 0.0
    %547 = vmatpush1.xpose.msra.mxu0 0.0
    %548 = vmatprep.subr.mxu0 0.0
    %549 = vmatpush1.xpose.msra.mxu0 0.0
    %550 = vmatprep.subr.mxu0 0.0
    %551 = vmatpush1.xpose.msra.mxu0 0.0
    %552 = vmatprep.subr.mxu0 0.0
    %553 = vmatpush1.xpose.msra.mxu0 0.0
    %554 = vmatprep.subr.mxu0 0.0
    %555 = vmatpush1.xpose.msra.mxu0 0.0
    %556 = vmatprep.subr.mxu0 0.0
    %557 = vmatpush1.xpose.msra.mxu0 0.0
    %558 = vmatprep.subr.mxu0 0.0
    %559 = vmatpush1.xpose.msra.mxu0 0.0
    %560 = vmatprep.subr.mxu0 0.0
    %561 = vmatpush1.xpose.msra.mxu0 0.0
    %562 = vmatprep.subr.mxu0 0.0
    %563 = vmatpush1.xpose.msra.mxu0 0.0
    %564 = vmatprep.subr.mxu0 0.0
    %565 = vmatpush1.xpose.msra.mxu0 0.0
    %566 = vmatprep.subr.mxu0 0.0
    %567 = vmatpush1.xpose.msra.mxu0 0.0
    %568 = vmatprep.subr.mxu0 0.0
    %569 = vmatpush1.xpose.msra.mxu0 0.0
    %570 = vmatprep.subr.mxu0 0.0
    %571 = vmatpush1.xpose.msra.mxu0 0.0
    %572 = vmatprep.subr.mxu0 0.0
    %573 = vmatpush1.xpose.msra.mxu0 0.0
    %574 = vmatprep.subr.mxu0 0.0
    %575 = vmatpush1.xpose.msra.mxu0 0.0
    %576 = vmatprep.mubr.f32.mxu0 0.0
    %577 = vmatmul.mubr.f32.gmra.mrb[0].mxu0 %v510
    %v578 = vpop.f32.mrb[0].mxu0
    %v579 = vadd.f32 0.0, %v578
    %v580 = vpop.f32.mrb[0].mxu0
    %581 = vdwg.mxu0
    %582 = vmatprep.subr.mxu0 0.0
    %583 = vmatpush1.msra.mxu0 %v426
    %584 = vmatprep.subr.mxu0 0.0
    %585 = vmatpush1.msra.mxu0 0.0
    %586 = vmatprep.subr.mxu0 0.0
    %587 = vmatpush1.msra.mxu0 0.0
    %588 = vmatprep.subr.mxu0 0.0
    %589 = vmatpush1.msra.mxu0 0.0
    %590 = vmatprep.subr.mxu0 0.0
    %591 = vmatpush1.msra.mxu0 0.0
    %592 = vmatprep.subr.mxu0 0.0
    %593 = vmatpush1.msra.mxu0 0.0
    %594 = vmatprep.subr.mxu0 0.0
    %595 = vmatpush1.msra.mxu0 0.0
    %596 = vmatprep.subr.mxu0 0.0
    %597 = vmatpush1.msra.mxu0 0.0
    %598 = vmatprep.subr.mxu0 0.0
    %599 = vmatpush1.msra.mxu0 0.0
    %600 = vmatprep.subr.mxu0 0.0
    %601 = vmatpush1.msra.mxu0 0.0
    %602 = vmatprep.subr.mxu0 0.0
    %603 = vmatpush1.msra.mxu0 0.0
    %604 = vmatprep.subr.mxu0 0.0
    %605 = vmatpush1.msra.mxu0 0.0
    %606 = vmatprep.subr.mxu0 0.0
    %607 = vmatpush1.msra.mxu0 0.0
    %608 = vmatprep.subr.mxu0 0.0
    %609 = vmatpush1.msra.mxu0 0.0
    %610 = vmatprep.subr.mxu0 0.0
    %611 = vmatpush1.msra.mxu0 0.0
    %612 = vmatprep.subr.mxu0 0.0
    %613 = vmatpush1.msra.mxu0 0.0
    %614 = vmatprep.subr.mxu0 0.0
    %615 = vmatpush1.msra.mxu0 0.0
    %616 = vmatprep.subr.mxu0 0.0
    %617 = vmatpush1.msra.mxu0 0.0
    %618 = vmatprep.subr.mxu0 0.0
    %619 = vmatpush1.msra.mxu0 0.0
    %620 = vmatprep.subr.mxu0 0.0
    %621 = vmatpush1.msra.mxu0 0.0
    %622 = vmatprep.subr.mxu0 0.0
    %623 = vmatpush1.msra.mxu0 0.0
    %624 = vmatprep.subr.mxu0 0.0
    %625 = vmatpush1.msra.mxu0 0.0
    %626 = vmatprep.subr.mxu0 0.0
    %627 = vmatpush1.msra.mxu0 0.0
    %628 = vmatprep.subr.mxu0 0.0
    %629 = vmatpush1.msra.mxu0 0.0
    %630 = vmatprep.subr.mxu0 0.0
    %631 = vmatpush1.msra.mxu0 0.0
    %632 = vmatprep.subr.mxu0 0.0
    %633 = vmatpush1.msra.mxu0 0.0
    %634 = vmatprep.subr.mxu0 0.0
    %635 = vmatpush1.msra.mxu0 0.0
    %636 = vmatprep.subr.mxu0 0.0
    %637 = vmatpush1.msra.mxu0 0.0
    %638 = vmatprep.subr.mxu0 0.0
    %639 = vmatpush1.msra.mxu0 0.0
    %640 = vmatprep.subr.mxu0 0.0
    %641 = vmatpush1.msra.mxu0 0.0
    %642 = vmatprep.subr.mxu0 0.0
    %643 = vmatpush1.msra.mxu0 0.0
    %644 = vmatprep.subr.mxu0 0.0
    %645 = vmatpush1.msra.mxu0 0.0
    %646 = vmatprep.mubr.f32.mxu0 0.0
    %647 = vmatmul.mubr.f32.gmra.mrb[0].mxu0 %v510
    %v648 = vpop.f32.mrb[0].mxu0
    %v649 = vadd.f32 0.0, %v648
    %v650 = vpop.f32.mrb[0].mxu0
    %651 = vdwg.mxu0
    %v652 = vlaneseq
    %v653 = vshrl.u32 %v652, 7
    %v654 = vsub.s32 0, %v653
    %v655 = vrot.slane %v506, %v654
    %v656 = vadd.f32 %v432, %v655
    %v657 = vmul.f32 %v579, 2.0
    %v658 = vsub.f32 %v656, %v657
    %v659 = vmax.f32 %v658, 0.0
    %v660 = vlaneseq
    %v661 = vshrl.u32 %v660, 7
    %v662 = vsub.s32 0, %v661
    %v663 = vrot.slane %v427, %v662
    %v664 = vadd.f32 %v432, %v663
    %v665 = vmul.f32 %v649, 2.0
    %v666 = vsub.f32 %v664, %v665
    %v667 = vmax.f32 %v666, 0.0
    %v668 = vmul.f32 %v659, -0.5
    %v669 = vmul.f32 %v668, 1.442695
    %v670 = vpow.pop %v669
    %v671 = vstv %s423
    %v672 = vmul.f32 %v671, %v670
    %v673 = vmul.f32 %v667, -0.5
    %v674 = vmul.f32 %v673, 1.442695
    %v675 = vpow.pop %v674
    %v676 = vmul.f32 %v671, %v675
    %v678 = vsel %vm55, %v676, 0
    %680 = vmatprep.subr.mxu0 0.0
    %681 = vmatpush1.msra.mxu0 %v420
    %682 = vmatprep.subr.mxu0 0.0
    %683 = vmatpush1.msra.mxu0 %v421
    %684 = vmatprep.subr.mxu0 0.0
    %685 = vmatpush1.msra.mxu0 0.0
    %686 = vmatprep.subr.mxu0 0.0
    %687 = vmatpush1.msra.mxu0 0.0
    %688 = vmatprep.subr.mxu0 0.0
    %689 = vmatpush1.msra.mxu0 0.0
    %690 = vmatprep.subr.mxu0 0.0
    %691 = vmatpush1.msra.mxu0 0.0
    %692 = vmatprep.subr.mxu0 0.0
    %693 = vmatpush1.msra.mxu0 0.0
    %694 = vmatprep.subr.mxu0 0.0
    %695 = vmatpush1.msra.mxu0 0.0
    %696 = vmatprep.subr.mxu0 0.0
    %697 = vmatpush1.msra.mxu0 0.0
    %698 = vmatprep.subr.mxu0 0.0
    %699 = vmatpush1.msra.mxu0 0.0
    %700 = vmatprep.subr.mxu0 0.0
    %701 = vmatpush1.msra.mxu0 0.0
    %702 = vmatprep.subr.mxu0 0.0
    %703 = vmatpush1.msra.mxu0 0.0
    %704 = vmatprep.subr.mxu0 0.0
    %705 = vmatpush1.msra.mxu0 0.0
    %706 = vmatprep.subr.mxu0 0.0
    %707 = vmatpush1.msra.mxu0 0.0
    %708 = vmatprep.subr.mxu0 0.0
    %709 = vmatpush1.msra.mxu0 0.0
    %710 = vmatprep.subr.mxu0 0.0
    %711 = vmatpush1.msra.mxu0 0.0
    %712 = vmatprep.subr.mxu0 0.0
    %713 = vmatpush1.msra.mxu0 0.0
    %714 = vmatprep.subr.mxu0 0.0
    %715 = vmatpush1.msra.mxu0 0.0
    %716 = vmatprep.subr.mxu0 0.0
    %717 = vmatpush1.msra.mxu0 0.0
    %718 = vmatprep.subr.mxu0 0.0
    %719 = vmatpush1.msra.mxu0 0.0
    %720 = vmatprep.subr.mxu0 0.0
    %721 = vmatpush1.msra.mxu0 0.0
    %722 = vmatprep.subr.mxu0 0.0
    %723 = vmatpush1.msra.mxu0 0.0
    %724 = vmatprep.subr.mxu0 0.0
    %725 = vmatpush1.msra.mxu0 0.0
    %726 = vmatprep.subr.mxu0 0.0
    %727 = vmatpush1.msra.mxu0 0.0
    %728 = vmatprep.subr.mxu0 0.0
    %729 = vmatpush1.msra.mxu0 0.0
    %730 = vmatprep.subr.mxu0 0.0
    %731 = vmatpush1.msra.mxu0 0.0
    %732 = vmatprep.subr.mxu0 0.0
    %733 = vmatpush1.msra.mxu0 0.0
    %734 = vmatprep.subr.mxu0 0.0
    %735 = vmatpush1.msra.mxu0 0.0
    %736 = vmatprep.subr.mxu0 0.0
    %737 = vmatpush1.msra.mxu0 0.0
    %738 = vmatprep.subr.mxu0 0.0
    %739 = vmatpush1.msra.mxu0 0.0
    %740 = vmatprep.subr.mxu0 0.0
    %741 = vmatpush1.msra.mxu0 0.0
    %742 = vmatprep.subr.mxu0 0.0
    %743 = vmatpush1.msra.mxu0 0.0
    %744 = vmatprep.mubr.f32.mxu0 0.0
    %745 = vmatmul.mubr.f32.gmra.mrb[0].mxu0 %v678
    %v746 = vpop.f32.mrb[0].mxu0
    %v747 = vadd.f32 0.0, %v746
    %v748 = vpop.f32.mrb[0].mxu0
    %749 = vdwg.mxu0
    %v751 = vsel %vm55, %v747, 0
    %753 = vmatprep.subr.mxu0 0.0
    %754 = vmatpush1.xpose.msra.mxu0 %v678
    %755 = vmatprep.subr.mxu0 0.0
    %756 = vmatpush1.xpose.msra.mxu0 0.0
    %757 = vmatprep.subr.mxu0 0.0
    %758 = vmatpush1.xpose.msra.mxu0 0.0
    %759 = vmatprep.subr.mxu0 0.0
    %760 = vmatpush1.xpose.msra.mxu0 0.0
    %761 = vmatprep.subr.mxu0 0.0
    %762 = vmatpush1.xpose.msra.mxu0 0.0
    %763 = vmatprep.subr.mxu0 0.0
    %764 = vmatpush1.xpose.msra.mxu0 0.0
    %765 = vmatprep.subr.mxu0 0.0
    %766 = vmatpush1.xpose.msra.mxu0 0.0
    %767 = vmatprep.subr.mxu0 0.0
    %768 = vmatpush1.xpose.msra.mxu0 0.0
    %769 = vmatprep.subr.mxu0 0.0
    %770 = vmatpush1.xpose.msra.mxu0 0.0
    %771 = vmatprep.subr.mxu0 0.0
    %772 = vmatpush1.xpose.msra.mxu0 0.0
    %773 = vmatprep.subr.mxu0 0.0
    %774 = vmatpush1.xpose.msra.mxu0 0.0
    %775 = vmatprep.subr.mxu0 0.0
    %776 = vmatpush1.xpose.msra.mxu0 0.0
    %777 = vmatprep.subr.mxu0 0.0
    %778 = vmatpush1.xpose.msra.mxu0 0.0
    %779 = vmatprep.subr.mxu0 0.0
    %780 = vmatpush1.xpose.msra.mxu0 0.0
    %781 = vmatprep.subr.mxu0 0.0
    %782 = vmatpush1.xpose.msra.mxu0 0.0
    %783 = vmatprep.subr.mxu0 0.0
    %784 = vmatpush1.xpose.msra.mxu0 0.0
    %785 = vmatprep.subr.mxu0 0.0
    %786 = vmatpush1.xpose.msra.mxu0 0.0
    %787 = vmatprep.subr.mxu0 0.0
    %788 = vmatpush1.xpose.msra.mxu0 0.0
    %789 = vmatprep.subr.mxu0 0.0
    %790 = vmatpush1.xpose.msra.mxu0 0.0
    %791 = vmatprep.subr.mxu0 0.0
    %792 = vmatpush1.xpose.msra.mxu0 0.0
    %793 = vmatprep.subr.mxu0 0.0
    %794 = vmatpush1.xpose.msra.mxu0 0.0
    %795 = vmatprep.subr.mxu0 0.0
    %796 = vmatpush1.xpose.msra.mxu0 0.0
    %797 = vmatprep.subr.mxu0 0.0
    %798 = vmatpush1.xpose.msra.mxu0 0.0
    %799 = vmatprep.subr.mxu0 0.0
    %800 = vmatpush1.xpose.msra.mxu0 0.0
    %801 = vmatprep.subr.mxu0 0.0
    %802 = vmatpush1.xpose.msra.mxu0 0.0
    %803 = vmatprep.subr.mxu0 0.0
    %804 = vmatpush1.xpose.msra.mxu0 0.0
    %805 = vmatprep.subr.mxu0 0.0
    %806 = vmatpush1.xpose.msra.mxu0 0.0
    %807 = vmatprep.subr.mxu0 0.0
    %808 = vmatpush1.xpose.msra.mxu0 0.0
    %809 = vmatprep.subr.mxu0 0.0
    %810 = vmatpush1.xpose.msra.mxu0 0.0
    %811 = vmatprep.subr.mxu0 0.0
    %812 = vmatpush1.xpose.msra.mxu0 0.0
    %813 = vmatprep.subr.mxu0 0.0
    %814 = vmatpush1.xpose.msra.mxu0 0.0
    %815 = vmatprep.subr.mxu0 0.0
    %816 = vmatpush1.xpose.msra.mxu0 0.0
    %817 = vmatprep.mubr.f32.mxu0 0.0
    %818 = vmatmul.mubr.f32.gmra.mrb[0].mxu0 %v751
    %v819 = vpop.f32.mrb[0].mxu0
    %v820 = vadd.f32 0.0, %v819
    %v821 = vpop.f32.mrb[0].mxu0
    %822 = vdwg.mxu0
    %v823 = vadd.f32 %v672, %v820
    %v824 = vmul.f32 %v418, 1e-09
    %v825 = vadd.f32 %v823, %v824
    %826 = vst.msk [vmem:[%s11] sm:$0xff] %vm429, %v825
    %v827 = vld [vmem:[%s5] sm:$0xff]
    %vm828 = vcmp.eq.s32.totalorder %v415, 6
    %v829 = vsel %vm828, %v283, %v827
    %s830 = scalar_lea.vmem %s9, 16
    %v831 = vld [vmem:[%s830] sm:$0xff]
    %v832 = vld [vmem:[%s830 + $0x8] sm:$0xff]
    %s833 = sld [smem:[#allocation2 + $0x1]]
    %s834 = sld [smem:[#allocation2 + $0x4]]
    %v835 = vstv %s833
    %v836 = vmul.f32 %v829, %v835
    %v837 = vld [vmem:[%s8 + $0x10] sm:$0x7f]
    %v838 = vld [vmem:[%s8 + $0x17] sm:$0x1]
    %v839 = vmul.f32 %v836, %v836
    %vm840 = vcmask 56320
    %v841 = vsel %vm840, %v839, 0.0
    %842 = vadd.xlane.f32.xlu0 %v841
    %v843 = vpop.xlane.xlu0 %842
    %v844 = vsel %vm840, 1.0, 0
    %v847 = vsel %vm840, %v839, 0
    %849 = vmatprep.subr.mxu0 0.0
    %850 = vmatpush1.xpose.msra.mxu0 %v847
    %851 = vmatprep.subr.mxu0 0.0
    %852 = vmatpush1.xpose.msra.mxu0 0.0
    %853 = vmatprep.subr.mxu0 0.0
    %854 = vmatpush1.xpose.msra.mxu0 0.0
    %855 = vmatprep.subr.mxu0 0.0
    %856 = vmatpush1.xpose.msra.mxu0 0.0
    %857 = vmatprep.subr.mxu0 0.0
    %858 = vmatpush1.xpose.msra.mxu0 0.0
    %859 = vmatprep.subr.mxu0 0.0
    %860 = vmatpush1.xpose.msra.mxu0 0.0
    %861 = vmatprep.subr.mxu0 0.0
    %862 = vmatpush1.xpose.msra.mxu0 0.0
    %863 = vmatprep.subr.mxu0 0.0
    %864 = vmatpush1.xpose.msra.mxu0 0.0
    %865 = vmatprep.subr.mxu0 0.0
    %866 = vmatpush1.xpose.msra.mxu0 0.0
    %867 = vmatprep.subr.mxu0 0.0
    %868 = vmatpush1.xpose.msra.mxu0 0.0
    %869 = vmatprep.subr.mxu0 0.0
    %870 = vmatpush1.xpose.msra.mxu0 0.0
    %871 = vmatprep.subr.mxu0 0.0
    %872 = vmatpush1.xpose.msra.mxu0 0.0
    %873 = vmatprep.subr.mxu0 0.0
    %874 = vmatpush1.xpose.msra.mxu0 0.0
    %875 = vmatprep.subr.mxu0 0.0
    %876 = vmatpush1.xpose.msra.mxu0 0.0
    %877 = vmatprep.subr.mxu0 0.0
    %878 = vmatpush1.xpose.msra.mxu0 0.0
    %879 = vmatprep.subr.mxu0 0.0
    %880 = vmatpush1.xpose.msra.mxu0 0.0
    %881 = vmatprep.subr.mxu0 0.0
    %882 = vmatpush1.xpose.msra.mxu0 0.0
    %883 = vmatprep.subr.mxu0 0.0
    %884 = vmatpush1.xpose.msra.mxu0 0.0
    %885 = vmatprep.subr.mxu0 0.0
    %886 = vmatpush1.xpose.msra.mxu0 0.0
    %887 = vmatprep.subr.mxu0 0.0
    %888 = vmatpush1.xpose.msra.mxu0 0.0
    %889 = vmatprep.subr.mxu0 0.0
    %890 = vmatpush1.xpose.msra.mxu0 0.0
    %891 = vmatprep.subr.mxu0 0.0
    %892 = vmatpush1.xpose.msra.mxu0 0.0
    %893 = vmatprep.subr.mxu0 0.0
    %894 = vmatpush1.xpose.msra.mxu0 0.0
    %895 = vmatprep.subr.mxu0 0.0
    %896 = vmatpush1.xpose.msra.mxu0 0.0
    %897 = vmatprep.subr.mxu0 0.0
    %898 = vmatpush1.xpose.msra.mxu0 0.0
    %899 = vmatprep.subr.mxu0 0.0
    %900 = vmatpush1.xpose.msra.mxu0 0.0
    %901 = vmatprep.subr.mxu0 0.0
    %902 = vmatpush1.xpose.msra.mxu0 0.0
    %903 = vmatprep.subr.mxu0 0.0
    %904 = vmatpush1.xpose.msra.mxu0 0.0
    %905 = vmatprep.subr.mxu0 0.0
    %906 = vmatpush1.xpose.msra.mxu0 0.0
    %907 = vmatprep.subr.mxu0 0.0
    %908 = vmatpush1.xpose.msra.mxu0 0.0
    %909 = vmatprep.subr.mxu0 0.0
    %910 = vmatpush1.xpose.msra.mxu0 0.0
    %911 = vmatprep.subr.mxu0 0.0
    %912 = vmatpush1.xpose.msra.mxu0 0.0
    %913 = vmatprep.mubr.f32.mxu0 0.0
    %914 = vmatmul.mubr.f32.gmra.mrb[0].mxu0 %v844
    %v915 = vpop.f32.mrb[0].mxu0
    %v916 = vadd.f32 0.0, %v915
    %v917 = vpop.f32.mrb[0].mxu0
    %918 = vdwg.mxu0
    %v920 = vsel %vm840, %v836, 0
    %922 = vmatprep.subr.mxu0 0.0
    %923 = vmatpush1.xpose.msra.mxu0 %v920
    %924 = vmatprep.subr.mxu0 0.0
    %925 = vmatpush1.xpose.msra.mxu0 0.0
    %926 = vmatprep.subr.mxu0 0.0
    %927 = vmatpush1.xpose.msra.mxu0 0.0
    %928 = vmatprep.subr.mxu0 0.0
    %929 = vmatpush1.xpose.msra.mxu0 0.0
    %930 = vmatprep.subr.mxu0 0.0
    %931 = vmatpush1.xpose.msra.mxu0 0.0
    %932 = vmatprep.subr.mxu0 0.0
    %933 = vmatpush1.xpose.msra.mxu0 0.0
    %934 = vmatprep.subr.mxu0 0.0
    %935 = vmatpush1.xpose.msra.mxu0 0.0
    %936 = vmatprep.subr.mxu0 0.0
    %937 = vmatpush1.xpose.msra.mxu0 0.0
    %938 = vmatprep.subr.mxu0 0.0
    %939 = vmatpush1.xpose.msra.mxu0 0.0
    %940 = vmatprep.subr.mxu0 0.0
    %941 = vmatpush1.xpose.msra.mxu0 0.0
    %942 = vmatprep.subr.mxu0 0.0
    %943 = vmatpush1.xpose.msra.mxu0 0.0
    %944 = vmatprep.subr.mxu0 0.0
    %945 = vmatpush1.xpose.msra.mxu0 0.0
    %946 = vmatprep.subr.mxu0 0.0
    %947 = vmatpush1.xpose.msra.mxu0 0.0
    %948 = vmatprep.subr.mxu0 0.0
    %949 = vmatpush1.xpose.msra.mxu0 0.0
    %950 = vmatprep.subr.mxu0 0.0
    %951 = vmatpush1.xpose.msra.mxu0 0.0
    %952 = vmatprep.subr.mxu0 0.0
    %953 = vmatpush1.xpose.msra.mxu0 0.0
    %954 = vmatprep.subr.mxu0 0.0
    %955 = vmatpush1.xpose.msra.mxu0 0.0
    %956 = vmatprep.subr.mxu0 0.0
    %957 = vmatpush1.xpose.msra.mxu0 0.0
    %958 = vmatprep.subr.mxu0 0.0
    %959 = vmatpush1.xpose.msra.mxu0 0.0
    %960 = vmatprep.subr.mxu0 0.0
    %961 = vmatpush1.xpose.msra.mxu0 0.0
    %962 = vmatprep.subr.mxu0 0.0
    %963 = vmatpush1.xpose.msra.mxu0 0.0
    %964 = vmatprep.subr.mxu0 0.0
    %965 = vmatpush1.xpose.msra.mxu0 0.0
    %966 = vmatprep.subr.mxu0 0.0
    %967 = vmatpush1.xpose.msra.mxu0 0.0
    %968 = vmatprep.subr.mxu0 0.0
    %969 = vmatpush1.xpose.msra.mxu0 0.0
    %970 = vmatprep.subr.mxu0 0.0
    %971 = vmatpush1.xpose.msra.mxu0 0.0
    %972 = vmatprep.subr.mxu0 0.0
    %973 = vmatpush1.xpose.msra.mxu0 0.0
    %974 = vmatprep.subr.mxu0 0.0
    %975 = vmatpush1.xpose.msra.mxu0 0.0
    %976 = vmatprep.subr.mxu0 0.0
    %977 = vmatpush1.xpose.msra.mxu0 0.0
    %978 = vmatprep.subr.mxu0 0.0
    %979 = vmatpush1.xpose.msra.mxu0 0.0
    %980 = vmatprep.subr.mxu0 0.0
    %981 = vmatpush1.xpose.msra.mxu0 0.0
    %982 = vmatprep.subr.mxu0 0.0
    %983 = vmatpush1.xpose.msra.mxu0 0.0
    %984 = vmatprep.subr.mxu0 0.0
    %985 = vmatpush1.xpose.msra.mxu0 0.0
    %986 = vmatprep.mubr.f32.mxu0 0.0
    %987 = vmatmul.mubr.f32.gmra.mrb[0].mxu0 %v920
    %v988 = vpop.f32.mrb[0].mxu0
    %v989 = vadd.f32 0.0, %v988
    %v990 = vpop.f32.mrb[0].mxu0
    %991 = vdwg.mxu0
    %vm992 = vcmask 1046528
    %v994 = vsel %vm992, %v837, 0
    %996 = vmatprep.subr.mxu0 0.0
    %997 = vmatpush1.msra.mxu0 %v994
    %998 = vmatprep.subr.mxu0 0.0
    %999 = vmatpush1.msra.mxu0 0.0
    %1000 = vmatprep.subr.mxu0 0.0
    %1001 = vmatpush1.msra.mxu0 0.0
    %1002 = vmatprep.subr.mxu0 0.0
    %1003 = vmatpush1.msra.mxu0 0.0
    %1004 = vmatprep.subr.mxu0 0.0
    %1005 = vmatpush1.msra.mxu0 0.0
    %1006 = vmatprep.subr.mxu0 0.0
    %1007 = vmatpush1.msra.mxu0 0.0
    %1008 = vmatprep.subr.mxu0 0.0
    %1009 = vmatpush1.msra.mxu0 0.0
    %1010 = vmatprep.subr.mxu0 0.0
    %1011 = vmatpush1.msra.mxu0 0.0
    %1012 = vmatprep.subr.mxu0 0.0
    %1013 = vmatpush1.msra.mxu0 0.0
    %1014 = vmatprep.subr.mxu0 0.0
    %1015 = vmatpush1.msra.mxu0 0.0
    %1016 = vmatprep.subr.mxu0 0.0
    %1017 = vmatpush1.msra.mxu0 0.0
    %1018 = vmatprep.subr.mxu0 0.0
    %1019 = vmatpush1.msra.mxu0 0.0
    %1020 = vmatprep.subr.mxu0 0.0
    %1021 = vmatpush1.msra.mxu0 0.0
    %1022 = vmatprep.subr.mxu0 0.0
    %1023 = vmatpush1.msra.mxu0 0.0
    %1024 = vmatprep.subr.mxu0 0.0
    %1025 = vmatpush1.msra.mxu0 0.0
    %1026 = vmatprep.subr.mxu0 0.0
    %1027 = vmatpush1.msra.mxu0 0.0
    %1028 = vmatprep.subr.mxu0 0.0
    %1029 = vmatpush1.msra.mxu0 0.0
    %1030 = vmatprep.subr.mxu0 0.0
    %1031 = vmatpush1.msra.mxu0 0.0
    %1032 = vmatprep.subr.mxu0 0.0
    %1033 = vmatpush1.msra.mxu0 0.0
    %1034 = vmatprep.subr.mxu0 0.0
    %1035 = vmatpush1.msra.mxu0 0.0
    %1036 = vmatprep.subr.mxu0 0.0
    %1037 = vmatpush1.msra.mxu0 0.0
    %1038 = vmatprep.subr.mxu0 0.0
    %1039 = vmatpush1.msra.mxu0 0.0
    %1040 = vmatprep.subr.mxu0 0.0
    %1041 = vmatpush1.msra.mxu0 0.0
    %1042 = vmatprep.subr.mxu0 0.0
    %1043 = vmatpush1.msra.mxu0 0.0
    %1044 = vmatprep.subr.mxu0 0.0
    %1045 = vmatpush1.msra.mxu0 0.0
    %1046 = vmatprep.subr.mxu0 0.0
    %1047 = vmatpush1.msra.mxu0 0.0
    %1048 = vmatprep.subr.mxu0 0.0
    %1049 = vmatpush1.msra.mxu0 0.0
    %1050 = vmatprep.subr.mxu0 0.0
    %1051 = vmatpush1.msra.mxu0 0.0
    %1052 = vmatprep.subr.mxu0 0.0
    %1053 = vmatpush1.msra.mxu0 0.0
    %1054 = vmatprep.subr.mxu0 0.0
    %1055 = vmatpush1.msra.mxu0 0.0
    %1056 = vmatprep.subr.mxu0 0.0
    %1057 = vmatpush1.msra.mxu0 0.0
    %1058 = vmatprep.subr.mxu0 0.0
    %1059 = vmatpush1.msra.mxu0 0.0
    %1060 = vmatprep.mubr.f32.mxu0 0.0
    %1061 = vmatmul.mubr.f32.gmra.mrb[0].mxu0 %v920
    %v1062 = vpop.f32.mrb[0].mxu0
    %v1063 = vadd.f32 0.0, %v1062
    %v1064 = vpop.f32.mrb[0].mxu0
    %1065 = vdwg.mxu0
    %v1066 = vlaneseq
    %v1067 = vshrl.u32 %v1066, 7
    %v1068 = vsub.s32 0, %v1067
    %v1069 = vrot.slane %v916, %v1068
    %v1070 = vadd.f32 %v843, %v1069
    %v1071 = vmul.f32 %v989, 2.0
    %v1072 = vsub.f32 %v1070, %v1071
    %v1073 = vmax.f32 %v1072, 0.0
    %v1074 = vlaneseq
    %v1075 = vshrl.u32 %v1074, 7
    %v1076 = vsub.s32 0, %v1075
    %v1077 = vrot.slane %v838, %v1076
    %v1078 = vadd.f32 %v843, %v1077
    %v1079 = vmul.f32 %v1063, 2.0
    %v1080 = vsub.f32 %v1078, %v1079
    %v1081 = vmax.f32 %v1080, 0.0
    %v1082 = vrsqrt.pop %v1073
    %v1083 = vmul.f32 %v1073, %v1082
    %vm1084 = vcmp.eq.f32.partialorder %v1073, inf
    %v1085 = vsel %vm1084, %v1073, %v1083
    %vm1086 = vcmp.eq.f32.partialorder %v1073, 0.0
    %v1087 = vand.u32 %v1073, 2147483648
    %v1088 = vsel %vm1086, %v1087, %v1085
    %v1089 = vmul.f32 %v1088, 2.236068
    %v1090 = vadd.f32 %v1089, 1.0
    %v1091 = vmul.f32 %v1073, 1.6666666
    %v1092 = vadd.f32 %v1090, %v1091
    %v1093 = vmul.f32 %v1088, -2.236068
    %v1094 = vmul.f32 %v1093, 1.442695
    %v1095 = vpow.pop %v1094
    %v1096 = vmul.f32 %v1092, %v1095
    %v1097 = vstv %s834
    %v1098 = vmul.f32 %v1097, %v1096
    %v1099 = vrsqrt.pop %v1081
    %v1100 = vmul.f32 %v1081, %v1099
    %vm1101 = vcmp.eq.f32.partialorder %v1081, inf
    %v1102 = vsel %vm1101, %v1081, %v1100
    %vm1103 = vcmp.eq.f32.partialorder %v1081, 0.0
    %v1104 = vand.u32 %v1081, 2147483648
    %v1105 = vsel %vm1103, %v1104, %v1102
    %v1106 = vmul.f32 %v1105, 2.236068
    %v1107 = vadd.f32 %v1106, 1.0
    %v1108 = vmul.f32 %v1081, 1.6666666
    %v1109 = vadd.f32 %v1107, %v1108
    %v1110 = vmul.f32 %v1105, -2.236068
    %v1111 = vmul.f32 %v1110, 1.442695
    %v1112 = vpow.pop %v1111
    %v1113 = vmul.f32 %v1109, %v1112
    %v1114 = vmul.f32 %v1097, %v1113
    %v1116 = vsel %vm55, %v1114, 0
    %1118 = vmatprep.subr.mxu0 0.0
    %1119 = vmatpush1.msra.mxu0 %v831
    %1120 = vmatprep.subr.mxu0 0.0
    %1121 = vmatpush1.msra.mxu0 %v832
    %1122 = vmatprep.subr.mxu0 0.0
    %1123 = vmatpush1.msra.mxu0 0.0
    %1124 = vmatprep.subr.mxu0 0.0
    %1125 = vmatpush1.msra.mxu0 0.0
    %1126 = vmatprep.subr.mxu0 0.0
    %1127 = vmatpush1.msra.mxu0 0.0
    %1128 = vmatprep.subr.mxu0 0.0
    %1129 = vmatpush1.msra.mxu0 0.0
    %1130 = vmatprep.subr.mxu0 0.0
    %1131 = vmatpush1.msra.mxu0 0.0
    %1132 = vmatprep.subr.mxu0 0.0
    %1133 = vmatpush1.msra.mxu0 0.0
    %1134 = vmatprep.subr.mxu0 0.0
    %1135 = vmatpush1.msra.mxu0 0.0
    %1136 = vmatprep.subr.mxu0 0.0
    %1137 = vmatpush1.msra.mxu0 0.0
    %1138 = vmatprep.subr.mxu0 0.0
    %1139 = vmatpush1.msra.mxu0 0.0
    %1140 = vmatprep.subr.mxu0 0.0
    %1141 = vmatpush1.msra.mxu0 0.0
    %1142 = vmatprep.subr.mxu0 0.0
    %1143 = vmatpush1.msra.mxu0 0.0
    %1144 = vmatprep.subr.mxu0 0.0
    %1145 = vmatpush1.msra.mxu0 0.0
    %1146 = vmatprep.subr.mxu0 0.0
    %1147 = vmatpush1.msra.mxu0 0.0
    %1148 = vmatprep.subr.mxu0 0.0
    %1149 = vmatpush1.msra.mxu0 0.0
    %1150 = vmatprep.subr.mxu0 0.0
    %1151 = vmatpush1.msra.mxu0 0.0
    %1152 = vmatprep.subr.mxu0 0.0
    %1153 = vmatpush1.msra.mxu0 0.0
    %1154 = vmatprep.subr.mxu0 0.0
    %1155 = vmatpush1.msra.mxu0 0.0
    %1156 = vmatprep.subr.mxu0 0.0
    %1157 = vmatpush1.msra.mxu0 0.0
    %1158 = vmatprep.subr.mxu0 0.0
    %1159 = vmatpush1.msra.mxu0 0.0
    %1160 = vmatprep.subr.mxu0 0.0
    %1161 = vmatpush1.msra.mxu0 0.0
    %1162 = vmatprep.subr.mxu0 0.0
    %1163 = vmatpush1.msra.mxu0 0.0
    %1164 = vmatprep.subr.mxu0 0.0
    %1165 = vmatpush1.msra.mxu0 0.0
    %1166 = vmatprep.subr.mxu0 0.0
    %1167 = vmatpush1.msra.mxu0 0.0
    %1168 = vmatprep.subr.mxu0 0.0
    %1169 = vmatpush1.msra.mxu0 0.0
    %1170 = vmatprep.subr.mxu0 0.0
    %1171 = vmatpush1.msra.mxu0 0.0
    %1172 = vmatprep.subr.mxu0 0.0
    %1173 = vmatpush1.msra.mxu0 0.0
    %1174 = vmatprep.subr.mxu0 0.0
    %1175 = vmatpush1.msra.mxu0 0.0
    %1176 = vmatprep.subr.mxu0 0.0
    %1177 = vmatpush1.msra.mxu0 0.0
    %1178 = vmatprep.subr.mxu0 0.0
    %1179 = vmatpush1.msra.mxu0 0.0
    %1180 = vmatprep.subr.mxu0 0.0
    %1181 = vmatpush1.msra.mxu0 0.0
    %1182 = vmatprep.mubr.f32.mxu0 0.0
    %1183 = vmatmul.mubr.f32.gmra.mrb[0].mxu0 %v1116
    %v1184 = vpop.f32.mrb[0].mxu0
    %v1185 = vadd.f32 0.0, %v1184
    %v1186 = vpop.f32.mrb[0].mxu0
    %1187 = vdwg.mxu0
    %v1189 = vsel %vm55, %v1185, 0
    %1191 = vmatprep.subr.mxu0 0.0
    %1192 = vmatpush1.xpose.msra.mxu0 %v1116
    %1193 = vmatprep.subr.mxu0 0.0
    %1194 = vmatpush1.xpose.msra.mxu0 0.0
    %1195 = vmatprep.subr.mxu0 0.0
    %1196 = vmatpush1.xpose.msra.mxu0 0.0
    %1197 = vmatprep.subr.mxu0 0.0
    %1198 = vmatpush1.xpose.msra.mxu0 0.0
    %1199 = vmatprep.subr.mxu0 0.0
    %1200 = vmatpush1.xpose.msra.mxu0 0.0
    %1201 = vmatprep.subr.mxu0 0.0
    %1202 = vmatpush1.xpose.msra.mxu0 0.0
    %1203 = vmatprep.subr.mxu0 0.0
    %1204 = vmatpush1.xpose.msra.mxu0 0.0
    %1205 = vmatprep.subr.mxu0 0.0
    %1206 = vmatpush1.xpose.msra.mxu0 0.0
    %1207 = vmatprep.subr.mxu0 0.0
    %1208 = vmatpush1.xpose.msra.mxu0 0.0
    %1209 = vmatprep.subr.mxu0 0.0
    %1210 = vmatpush1.xpose.msra.mxu0 0.0
    %1211 = vmatprep.subr.mxu0 0.0
    %1212 = vmatpush1.xpose.msra.mxu0 0.0
    %1213 = vmatprep.subr.mxu0 0.0
    %1214 = vmatpush1.xpose.msra.mxu0 0.0
    %1215 = vmatprep.subr.mxu0 0.0
    %1216 = vmatpush1.xpose.msra.mxu0 0.0
    %1217 = vmatprep.subr.mxu0 0.0
    %1218 = vmatpush1.xpose.msra.mxu0 0.0
    %1219 = vmatprep.subr.mxu0 0.0
    %1220 = vmatpush1.xpose.msra.mxu0 0.0
    %1221 = vmatprep.subr.mxu0 0.0
    %1222 = vmatpush1.xpose.msra.mxu0 0.0
    %1223 = vmatprep.subr.mxu0 0.0
    %1224 = vmatpush1.xpose.msra.mxu0 0.0
    %1225 = vmatprep.subr.mxu0 0.0
    %1226 = vmatpush1.xpose.msra.mxu0 0.0
    %1227 = vmatprep.subr.mxu0 0.0
    %1228 = vmatpush1.xpose.msra.mxu0 0.0
    %1229 = vmatprep.subr.mxu0 0.0
    %1230 = vmatpush1.xpose.msra.mxu0 0.0
    %1231 = vmatprep.subr.mxu0 0.0
    %1232 = vmatpush1.xpose.msra.mxu0 0.0
    %1233 = vmatprep.subr.mxu0 0.0
    %1234 = vmatpush1.xpose.msra.mxu0 0.0
    %1235 = vmatprep.subr.mxu0 0.0
    %1236 = vmatpush1.xpose.msra.mxu0 0.0
    %1237 = vmatprep.subr.mxu0 0.0
    %1238 = vmatpush1.xpose.msra.mxu0 0.0
    %1239 = vmatprep.subr.mxu0 0.0
    %1240 = vmatpush1.xpose.msra.mxu0 0.0
    %1241 = vmatprep.subr.mxu0 0.0
    %1242 = vmatpush1.xpose.msra.mxu0 0.0
    %1243 = vmatprep.subr.mxu0 0.0
    %1244 = vmatpush1.xpose.msra.mxu0 0.0
    %1245 = vmatprep.subr.mxu0 0.0
    %1246 = vmatpush1.xpose.msra.mxu0 0.0
    %1247 = vmatprep.subr.mxu0 0.0
    %1248 = vmatpush1.xpose.msra.mxu0 0.0
    %1249 = vmatprep.subr.mxu0 0.0
    %1250 = vmatpush1.xpose.msra.mxu0 0.0
    %1251 = vmatprep.subr.mxu0 0.0
    %1252 = vmatpush1.xpose.msra.mxu0 0.0
    %1253 = vmatprep.subr.mxu0 0.0
    %1254 = vmatpush1.xpose.msra.mxu0 0.0
    %1255 = vmatprep.mubr.f32.mxu0 0.0
    %1256 = vmatmul.mubr.f32.gmra.mrb[0].mxu0 %v1189
    %v1257 = vpop.f32.mrb[0].mxu0
    %v1258 = vadd.f32 0.0, %v1257
    %v1259 = vpop.f32.mrb[0].mxu0
    %1260 = vdwg.mxu0
    %v1261 = vadd.f32 %v1098, %v1258
    %v1262 = vadd.f32 %v1261, %v824
    %s1263 = scalar_lea.vmem %s11, 8
    %1264 = vst.msk [vmem:[%s1263] sm:$0xff] %vm429, %v1262
    %v1265 = vld [vmem:[%s6] sm:$0xff]
    %v1266 = vsel %vm828, %v405, %v1265
    %s1267 = scalar_lea.vmem %s9, 32
    %v1268 = vld [vmem:[%s1267] sm:$0xff]
    %v1269 = vld [vmem:[%s1267 + $0x8] sm:$0xff]
    %s1270 = sld [smem:[#allocation2 + $0x2]]
    %s1271 = sld [smem:[#allocation2 + $0x5]]
    %v1272 = vstv %s1270
    %v1273 = vmul.f32 %v1266, %v1272
    %v1274 = vld [vmem:[%s8 + $0x18] sm:$0x7f]
    %v1275 = vld [vmem:[%s8 + $0x1f] sm:$0x1]
    %v1276 = vmul.f32 %v1273, %v1273
    %v1277 = vsel %vm840, %v1276, 0.0
    %1278 = vadd.xlane.f32.xlu0 %v1277
    %v1279 = vpop.xlane.xlu0 %1278
    %v1281 = vsel %vm840, %v1276, 0
    %1283 = vmatprep.subr.mxu0 0.0
    %1284 = vmatpush1.xpose.msra.mxu0 %v1281
    %1285 = vmatprep.subr.mxu0 0.0
    %1286 = vmatpush1.xpose.msra.mxu0 0.0
    %1287 = vmatprep.subr.mxu0 0.0
    %1288 = vmatpush1.xpose.msra.mxu0 0.0
    %1289 = vmatprep.subr.mxu0 0.0
    %1290 = vmatpush1.xpose.msra.mxu0 0.0
    %1291 = vmatprep.subr.mxu0 0.0
    %1292 = vmatpush1.xpose.msra.mxu0 0.0
    %1293 = vmatprep.subr.mxu0 0.0
    %1294 = vmatpush1.xpose.msra.mxu0 0.0
    %1295 = vmatprep.subr.mxu0 0.0
    %1296 = vmatpush1.xpose.msra.mxu0 0.0
    %1297 = vmatprep.subr.mxu0 0.0
    %1298 = vmatpush1.xpose.msra.mxu0 0.0
    %1299 = vmatprep.subr.mxu0 0.0
    %1300 = vmatpush1.xpose.msra.mxu0 0.0
    %1301 = vmatprep.subr.mxu0 0.0
    %1302 = vmatpush1.xpose.msra.mxu0 0.0
    %1303 = vmatprep.subr.mxu0 0.0
    %1304 = vmatpush1.xpose.msra.mxu0 0.0
    %1305 = vmatprep.subr.mxu0 0.0
    %1306 = vmatpush1.xpose.msra.mxu0 0.0
    %1307 = vmatprep.subr.mxu0 0.0
    %1308 = vmatpush1.xpose.msra.mxu0 0.0
    %1309 = vmatprep.subr.mxu0 0.0
    %1310 = vmatpush1.xpose.msra.mxu0 0.0
    %1311 = vmatprep.subr.mxu0 0.0
    %1312 = vmatpush1.xpose.msra.mxu0 0.0
    %1313 = vmatprep.subr.mxu0 0.0
    %1314 = vmatpush1.xpose.msra.mxu0 0.0
    %1315 = vmatprep.subr.mxu0 0.0
    %1316 = vmatpush1.xpose.msra.mxu0 0.0
    %1317 = vmatprep.subr.mxu0 0.0
    %1318 = vmatpush1.xpose.msra.mxu0 0.0
    %1319 = vmatprep.subr.mxu0 0.0
    %1320 = vmatpush1.xpose.msra.mxu0 0.0
    %1321 = vmatprep.subr.mxu0 0.0
    %1322 = vmatpush1.xpose.msra.mxu0 0.0
    %1323 = vmatprep.subr.mxu0 0.0
    %1324 = vmatpush1.xpose.msra.mxu0 0.0
    %1325 = vmatprep.subr.mxu0 0.0
    %1326 = vmatpush1.xpose.msra.mxu0 0.0
    %1327 = vmatprep.subr.mxu0 0.0
    %1328 = vmatpush1.xpose.msra.mxu0 0.0
    %1329 = vmatprep.subr.mxu0 0.0
    %1330 = vmatpush1.xpose.msra.mxu0 0.0
    %1331 = vmatprep.subr.mxu0 0.0
    %1332 = vmatpush1.xpose.msra.mxu0 0.0
    %1333 = vmatprep.subr.mxu0 0.0
    %1334 = vmatpush1.xpose.msra.mxu0 0.0
    %1335 = vmatprep.subr.mxu0 0.0
    %1336 = vmatpush1.xpose.msra.mxu0 0.0
    %1337 = vmatprep.subr.mxu0 0.0
    %1338 = vmatpush1.xpose.msra.mxu0 0.0
    %1339 = vmatprep.subr.mxu0 0.0
    %1340 = vmatpush1.xpose.msra.mxu0 0.0
    %1341 = vmatprep.subr.mxu0 0.0
    %1342 = vmatpush1.xpose.msra.mxu0 0.0
    %1343 = vmatprep.subr.mxu0 0.0
    %1344 = vmatpush1.xpose.msra.mxu0 0.0
    %1345 = vmatprep.subr.mxu0 0.0
    %1346 = vmatpush1.xpose.msra.mxu0 0.0
    %1347 = vmatprep.mubr.f32.mxu0 0.0
    %1348 = vmatmul.mubr.f32.gmra.mrb[0].mxu0 %v844
    %v1349 = vpop.f32.mrb[0].mxu0
    %v1350 = vadd.f32 0.0, %v1349
    %v1351 = vpop.f32.mrb[0].mxu0
    %1352 = vdwg.mxu0
    %v1354 = vsel %vm840, %v1273, 0
    %1356 = vmatprep.subr.mxu0 0.0
    %1357 = vmatpush1.xpose.msra.mxu0 %v1354
    %1358 = vmatprep.subr.mxu0 0.0
    %1359 = vmatpush1.xpose.msra.mxu0 0.0
    %1360 = vmatprep.subr.mxu0 0.0
    %1361 = vmatpush1.xpose.msra.mxu0 0.0
    %1362 = vmatprep.subr.mxu0 0.0
    %1363 = vmatpush1.xpose.msra.mxu0 0.0
    %1364 = vmatprep.subr.mxu0 0.0
    %1365 = vmatpush1.xpose.msra.mxu0 0.0
    %1366 = vmatprep.subr.mxu0 0.0
    %1367 = vmatpush1.xpose.msra.mxu0 0.0
    %1368 = vmatprep.subr.mxu0 0.0
    %1369 = vmatpush1.xpose.msra.mxu0 0.0
    %1370 = vmatprep.subr.mxu0 0.0
    %1371 = vmatpush1.xpose.msra.mxu0 0.0
    %1372 = vmatprep.subr.mxu0 0.0
    %1373 = vmatpush1.xpose.msra.mxu0 0.0
    %1374 = vmatprep.subr.mxu0 0.0
    %1375 = vmatpush1.xpose.msra.mxu0 0.0
    %1376 = vmatprep.subr.mxu0 0.0
    %1377 = vmatpush1.xpose.msra.mxu0 0.0
    %1378 = vmatprep.subr.mxu0 0.0
    %1379 = vmatpush1.xpose.msra.mxu0 0.0
    %1380 = vmatprep.subr.mxu0 0.0
    %1381 = vmatpush1.xpose.msra.mxu0 0.0
    %1382 = vmatprep.subr.mxu0 0.0
    %1383 = vmatpush1.xpose.msra.mxu0 0.0
    %1384 = vmatprep.subr.mxu0 0.0
    %1385 = vmatpush1.xpose.msra.mxu0 0.0
    %1386 = vmatprep.subr.mxu0 0.0
    %1387 = vmatpush1.xpose.msra.mxu0 0.0
    %1388 = vmatprep.subr.mxu0 0.0
    %1389 = vmatpush1.xpose.msra.mxu0 0.0
    %1390 = vmatprep.subr.mxu0 0.0
    %1391 = vmatpush1.xpose.msra.mxu0 0.0
    %1392 = vmatprep.subr.mxu0 0.0
    %1393 = vmatpush1.xpose.msra.mxu0 0.0
    %1394 = vmatprep.subr.mxu0 0.0
    %1395 = vmatpush1.xpose.msra.mxu0 0.0
    %1396 = vmatprep.subr.mxu0 0.0
    %1397 = vmatpush1.xpose.msra.mxu0 0.0
    %1398 = vmatprep.subr.mxu0 0.0
    %1399 = vmatpush1.xpose.msra.mxu0 0.0
    %1400 = vmatprep.subr.mxu0 0.0
    %1401 = vmatpush1.xpose.msra.mxu0 0.0
    %1402 = vmatprep.subr.mxu0 0.0
    %1403 = vmatpush1.xpose.msra.mxu0 0.0
    %1404 = vmatprep.subr.mxu0 0.0
    %1405 = vmatpush1.xpose.msra.mxu0 0.0
    %1406 = vmatprep.subr.mxu0 0.0
    %1407 = vmatpush1.xpose.msra.mxu0 0.0
    %1408 = vmatprep.subr.mxu0 0.0
    %1409 = vmatpush1.xpose.msra.mxu0 0.0
    %1410 = vmatprep.subr.mxu0 0.0
    %1411 = vmatpush1.xpose.msra.mxu0 0.0
    %1412 = vmatprep.subr.mxu0 0.0
    %1413 = vmatpush1.xpose.msra.mxu0 0.0
    %1414 = vmatprep.subr.mxu0 0.0
    %1415 = vmatpush1.xpose.msra.mxu0 0.0
    %1416 = vmatprep.subr.mxu0 0.0
    %1417 = vmatpush1.xpose.msra.mxu0 0.0
    %1418 = vmatprep.subr.mxu0 0.0
    %1419 = vmatpush1.xpose.msra.mxu0 0.0
    %1420 = vmatprep.mubr.f32.mxu0 0.0
    %1421 = vmatmul.mubr.f32.gmra.mrb[0].mxu0 %v1354
    %v1422 = vpop.f32.mrb[0].mxu0
    %v1423 = vadd.f32 0.0, %v1422
    %v1424 = vpop.f32.mrb[0].mxu0
    %1425 = vdwg.mxu0
    %v1427 = vsel %vm992, %v1274, 0
    %1429 = vmatprep.subr.mxu0 0.0
    %1430 = vmatpush1.msra.mxu0 %v1427
    %1431 = vmatprep.subr.mxu0 0.0
    %1432 = vmatpush1.msra.mxu0 0.0
    %1433 = vmatprep.subr.mxu0 0.0
    %1434 = vmatpush1.msra.mxu0 0.0
    %1435 = vmatprep.subr.mxu0 0.0
    %1436 = vmatpush1.msra.mxu0 0.0
    %1437 = vmatprep.subr.mxu0 0.0
    %1438 = vmatpush1.msra.mxu0 0.0
    %1439 = vmatprep.subr.mxu0 0.0
    %1440 = vmatpush1.msra.mxu0 0.0
    %1441 = vmatprep.subr.mxu0 0.0
    %1442 = vmatpush1.msra.mxu0 0.0
    %1443 = vmatprep.subr.mxu0 0.0
    %1444 = vmatpush1.msra.mxu0 0.0
    %1445 = vmatprep.subr.mxu0 0.0
    %1446 = vmatpush1.msra.mxu0 0.0
    %1447 = vmatprep.subr.mxu0 0.0
    %1448 = vmatpush1.msra.mxu0 0.0
    %1449 = vmatprep.subr.mxu0 0.0
    %1450 = vmatpush1.msra.mxu0 0.0
    %1451 = vmatprep.subr.mxu0 0.0
    %1452 = vmatpush1.msra.mxu0 0.0
    %1453 = vmatprep.subr.mxu0 0.0
    %1454 = vmatpush1.msra.mxu0 0.0
    %1455 = vmatprep.subr.mxu0 0.0
    %1456 = vmatpush1.msra.mxu0 0.0
    %1457 = vmatprep.subr.mxu0 0.0
    %1458 = vmatpush1.msra.mxu0 0.0
    %1459 = vmatprep.subr.mxu0 0.0
    %1460 = vmatpush1.msra.mxu0 0.0
    %1461 = vmatprep.subr.mxu0 0.0
    %1462 = vmatpush1.msra.mxu0 0.0
    %1463 = vmatprep.subr.mxu0 0.0
    %1464 = vmatpush1.msra.mxu0 0.0
    %1465 = vmatprep.subr.mxu0 0.0
    %1466 = vmatpush1.msra.mxu0 0.0
    %1467 = vmatprep.subr.mxu0 0.0
    %1468 = vmatpush1.msra.mxu0 0.0
    %1469 = vmatprep.subr.mxu0 0.0
    %1470 = vmatpush1.msra.mxu0 0.0
    %1471 = vmatprep.subr.mxu0 0.0
    %1472 = vmatpush1.msra.mxu0 0.0
    %1473 = vmatprep.subr.mxu0 0.0
    %1474 = vmatpush1.msra.mxu0 0.0
    %1475 = vmatprep.subr.mxu0 0.0
    %1476 = vmatpush1.msra.mxu0 0.0
    %1477 = vmatprep.subr.mxu0 0.0
    %1478 = vmatpush1.msra.mxu0 0.0
    %1479 = vmatprep.subr.mxu0 0.0
    %1480 = vmatpush1.msra.mxu0 0.0
    %1481 = vmatprep.subr.mxu0 0.0
    %1482 = vmatpush1.msra.mxu0 0.0
    %1483 = vmatprep.subr.mxu0 0.0
    %1484 = vmatpush1.msra.mxu0 0.0
    %1485 = vmatprep.subr.mxu0 0.0
    %1486 = vmatpush1.msra.mxu0 0.0
    %1487 = vmatprep.subr.mxu0 0.0
    %1488 = vmatpush1.msra.mxu0 0.0
    %1489 = vmatprep.subr.mxu0 0.0
    %1490 = vmatpush1.msra.mxu0 0.0
    %1491 = vmatprep.subr.mxu0 0.0
    %1492 = vmatpush1.msra.mxu0 0.0
    %1493 = vmatprep.mubr.f32.mxu0 0.0
    %1494 = vmatmul.mubr.f32.gmra.mrb[0].mxu0 %v1354
    %v1495 = vpop.f32.mrb[0].mxu0
    %v1496 = vadd.f32 0.0, %v1495
    %v1497 = vpop.f32.mrb[0].mxu0
    %1498 = vdwg.mxu0
    %v1499 = vlaneseq
    %v1500 = vshrl.u32 %v1499, 7
    %v1501 = vsub.s32 0, %v1500
    %v1502 = vrot.slane %v1350, %v1501
    %v1503 = vadd.f32 %v1279, %v1502
    %v1504 = vmul.f32 %v1423, 2.0
    %v1505 = vsub.f32 %v1503, %v1504
    %v1506 = vmax.f32 %v1505, 0.0
    %v1507 = vlaneseq
    %v1508 = vshrl.u32 %v1507, 7
    %v1509 = vsub.s32 0, %v1508
    %v1510 = vrot.slane %v1275, %v1509
    %v1511 = vadd.f32 %v1279, %v1510
    %v1512 = vmul.f32 %v1496, 2.0
    %v1513 = vsub.f32 %v1511, %v1512
    %v1514 = vmax.f32 %v1513, 0.0
    %v1515 = vrsqrt.pop %v1506
    %v1516 = vmul.f32 %v1506, %v1515
    %vm1517 = vcmp.eq.f32.partialorder %v1506, inf
    %v1518 = vsel %vm1517, %v1506, %v1516
    %vm1519 = vcmp.eq.f32.partialorder %v1506, 0.0
    %v1520 = vand.u32 %v1506, 2147483648
    %v1521 = vsel %vm1519, %v1520, %v1518
    %v1522 = vmul.f32 %v1521, 2.236068
    %v1523 = vadd.f32 %v1522, 1.0
    %v1524 = vmul.f32 %v1506, 1.6666666
    %v1525 = vadd.f32 %v1523, %v1524
    %v1526 = vmul.f32 %v1521, -2.236068
    %v1527 = vmul.f32 %v1526, 1.442695
    %v1528 = vpow.pop %v1527
    %v1529 = vmul.f32 %v1525, %v1528
    %v1530 = vstv %s1271
    %v1531 = vmul.f32 %v1530, %v1529
    %v1532 = vrsqrt.pop %v1514
    %v1533 = vmul.f32 %v1514, %v1532
    %vm1534 = vcmp.eq.f32.partialorder %v1514, inf
    %v1535 = vsel %vm1534, %v1514, %v1533
    %vm1536 = vcmp.eq.f32.partialorder %v1514, 0.0
    %v1537 = vand.u32 %v1514, 2147483648
    %v1538 = vsel %vm1536, %v1537, %v1535
    %v1539 = vmul.f32 %v1538, 2.236068
    %v1540 = vadd.f32 %v1539, 1.0
    %v1541 = vmul.f32 %v1514, 1.6666666
    %v1542 = vadd.f32 %v1540, %v1541
    %v1543 = vmul.f32 %v1538, -2.236068
    %v1544 = vmul.f32 %v1543, 1.442695
    %v1545 = vpow.pop %v1544
    %v1546 = vmul.f32 %v1542, %v1545
    %v1547 = vmul.f32 %v1530, %v1546
    %v1549 = vsel %vm55, %v1547, 0
    %1551 = vmatprep.subr.mxu0 0.0
    %1552 = vmatpush1.msra.mxu0 %v1268
    %1553 = vmatprep.subr.mxu0 0.0
    %1554 = vmatpush1.msra.mxu0 %v1269
    %1555 = vmatprep.subr.mxu0 0.0
    %1556 = vmatpush1.msra.mxu0 0.0
    %1557 = vmatprep.subr.mxu0 0.0
    %1558 = vmatpush1.msra.mxu0 0.0
    %1559 = vmatprep.subr.mxu0 0.0
    %1560 = vmatpush1.msra.mxu0 0.0
    %1561 = vmatprep.subr.mxu0 0.0
    %1562 = vmatpush1.msra.mxu0 0.0
    %1563 = vmatprep.subr.mxu0 0.0
    %1564 = vmatpush1.msra.mxu0 0.0
    %1565 = vmatprep.subr.mxu0 0.0
    %1566 = vmatpush1.msra.mxu0 0.0
    %1567 = vmatprep.subr.mxu0 0.0
    %1568 = vmatpush1.msra.mxu0 0.0
    %1569 = vmatprep.subr.mxu0 0.0
    %1570 = vmatpush1.msra.mxu0 0.0
    %1571 = vmatprep.subr.mxu0 0.0
    %1572 = vmatpush1.msra.mxu0 0.0
    %1573 = vmatprep.subr.mxu0 0.0
    %1574 = vmatpush1.msra.mxu0 0.0
    %1575 = vmatprep.subr.mxu0 0.0
    %1576 = vmatpush1.msra.mxu0 0.0
    %1577 = vmatprep.subr.mxu0 0.0
    %1578 = vmatpush1.msra.mxu0 0.0
    %1579 = vmatprep.subr.mxu0 0.0
    %1580 = vmatpush1.msra.mxu0 0.0
    %1581 = vmatprep.subr.mxu0 0.0
    %1582 = vmatpush1.msra.mxu0 0.0
    %1583 = vmatprep.subr.mxu0 0.0
    %1584 = vmatpush1.msra.mxu0 0.0
    %1585 = vmatprep.subr.mxu0 0.0
    %1586 = vmatpush1.msra.mxu0 0.0
    %1587 = vmatprep.subr.mxu0 0.0
    %1588 = vmatpush1.msra.mxu0 0.0
    %1589 = vmatprep.subr.mxu0 0.0
    %1590 = vmatpush1.msra.mxu0 0.0
    %1591 = vmatprep.subr.mxu0 0.0
    %1592 = vmatpush1.msra.mxu0 0.0
    %1593 = vmatprep.subr.mxu0 0.0
    %1594 = vmatpush1.msra.mxu0 0.0
    %1595 = vmatprep.subr.mxu0 0.0
    %1596 = vmatpush1.msra.mxu0 0.0
    %1597 = vmatprep.subr.mxu0 0.0
    %1598 = vmatpush1.msra.mxu0 0.0
    %1599 = vmatprep.subr.mxu0 0.0
    %1600 = vmatpush1.msra.mxu0 0.0
    %1601 = vmatprep.subr.mxu0 0.0
    %1602 = vmatpush1.msra.mxu0 0.0
    %1603 = vmatprep.subr.mxu0 0.0
    %1604 = vmatpush1.msra.mxu0 0.0
    %1605 = vmatprep.subr.mxu0 0.0
    %1606 = vmatpush1.msra.mxu0 0.0
    %1607 = vmatprep.subr.mxu0 0.0
    %1608 = vmatpush1.msra.mxu0 0.0
    %1609 = vmatprep.subr.mxu0 0.0
    %1610 = vmatpush1.msra.mxu0 0.0
    %1611 = vmatprep.subr.mxu0 0.0
    %1612 = vmatpush1.msra.mxu0 0.0
    %1613 = vmatprep.subr.mxu0 0.0
    %1614 = vmatpush1.msra.mxu0 0.0
    %1615 = vmatprep.mubr.f32.mxu0 0.0
    %1616 = vmatmul.mubr.f32.gmra.mrb[0].mxu0 %v1549
    %v1617 = vpop.f32.mrb[0].mxu0
    %v1618 = vadd.f32 0.0, %v1617
    %v1619 = vpop.f32.mrb[0].mxu0
    %1620 = vdwg.mxu0
    %v1622 = vsel %vm55, %v1618, 0
    %1624 = vmatprep.subr.mxu0 0.0
    %1625 = vmatpush1.xpose.msra.mxu0 %v1549
    %1626 = vmatprep.subr.mxu0 0.0
    %1627 = vmatpush1.xpose.msra.mxu0 0.0
    %1628 = vmatprep.subr.mxu0 0.0
    %1629 = vmatpush1.xpose.msra.mxu0 0.0
    %1630 = vmatprep.subr.mxu0 0.0
    %1631 = vmatpush1.xpose.msra.mxu0 0.0
    %1632 = vmatprep.subr.mxu0 0.0
    %1633 = vmatpush1.xpose.msra.mxu0 0.0
    %1634 = vmatprep.subr.mxu0 0.0
    %1635 = vmatpush1.xpose.msra.mxu0 0.0
    %1636 = vmatprep.subr.mxu0 0.0
    %1637 = vmatpush1.xpose.msra.mxu0 0.0
    %1638 = vmatprep.subr.mxu0 0.0
    %1639 = vmatpush1.xpose.msra.mxu0 0.0
    %1640 = vmatprep.subr.mxu0 0.0
    %1641 = vmatpush1.xpose.msra.mxu0 0.0
    %1642 = vmatprep.subr.mxu0 0.0
    %1643 = vmatpush1.xpose.msra.mxu0 0.0
    %1644 = vmatprep.subr.mxu0 0.0
    %1645 = vmatpush1.xpose.msra.mxu0 0.0
    %1646 = vmatprep.subr.mxu0 0.0
    %1647 = vmatpush1.xpose.msra.mxu0 0.0
    %1648 = vmatprep.subr.mxu0 0.0
    %1649 = vmatpush1.xpose.msra.mxu0 0.0
    %1650 = vmatprep.subr.mxu0 0.0
    %1651 = vmatpush1.xpose.msra.mxu0 0.0
    %1652 = vmatprep.subr.mxu0 0.0
    %1653 = vmatpush1.xpose.msra.mxu0 0.0
    %1654 = vmatprep.subr.mxu0 0.0
    %1655 = vmatpush1.xpose.msra.mxu0 0.0
    %1656 = vmatprep.subr.mxu0 0.0
    %1657 = vmatpush1.xpose.msra.mxu0 0.0
    %1658 = vmatprep.subr.mxu0 0.0
    %1659 = vmatpush1.xpose.msra.mxu0 0.0
    %1660 = vmatprep.subr.mxu0 0.0
    %1661 = vmatpush1.xpose.msra.mxu0 0.0
    %1662 = vmatprep.subr.mxu0 0.0
    %1663 = vmatpush1.xpose.msra.mxu0 0.0
    %1664 = vmatprep.subr.mxu0 0.0
    %1665 = vmatpush1.xpose.msra.mxu0 0.0
    %1666 = vmatprep.subr.mxu0 0.0
    %1667 = vmatpush1.xpose.msra.mxu0 0.0
    %1668 = vmatprep.subr.mxu0 0.0
    %1669 = vmatpush1.xpose.msra.mxu0 0.0
    %1670 = vmatprep.subr.mxu0 0.0
    %1671 = vmatpush1.xpose.msra.mxu0 0.0
    %1672 = vmatprep.subr.mxu0 0.0
    %1673 = vmatpush1.xpose.msra.mxu0 0.0
    %1674 = vmatprep.subr.mxu0 0.0
    %1675 = vmatpush1.xpose.msra.mxu0 0.0
    %1676 = vmatprep.subr.mxu0 0.0
    %1677 = vmatpush1.xpose.msra.mxu0 0.0
    %1678 = vmatprep.subr.mxu0 0.0
    %1679 = vmatpush1.xpose.msra.mxu0 0.0
    %1680 = vmatprep.subr.mxu0 0.0
    %1681 = vmatpush1.xpose.msra.mxu0 0.0
    %1682 = vmatprep.subr.mxu0 0.0
    %1683 = vmatpush1.xpose.msra.mxu0 0.0
    %1684 = vmatprep.subr.mxu0 0.0
    %1685 = vmatpush1.xpose.msra.mxu0 0.0
    %1686 = vmatprep.subr.mxu0 0.0
    %1687 = vmatpush1.xpose.msra.mxu0 0.0
    %1688 = vmatprep.mubr.f32.mxu0 0.0
    %1689 = vmatmul.mubr.f32.gmra.mrb[0].mxu0 %v1622
    %v1690 = vpop.f32.mrb[0].mxu0
    %v1691 = vadd.f32 0.0, %v1690
    %v1692 = vpop.f32.mrb[0].mxu0
    %1693 = vdwg.mxu0
    %v1694 = vadd.f32 %v1531, %v1691
    %v1695 = vadd.f32 %v1694, %v824
    %s1696 = scalar_lea.vmem %s11, 16
    %1697 = vst.msk [vmem:[%s1696] sm:$0xff] %vm429, %v1695
    // Predicated region
    $region46: #{state_space_svgp_forward.1} parent=1 // pred_check
      _
    $region47: #{state_space_svgp_forward.1} parent=1 // pred_check_branch
      %1699 = sbr.rel (0) target = $region49
    $region48: #{state_space_svgp_forward.1} parent=1 // pred_region
      _
    $region49: #{state_space_svgp_forward.1} parent=1 // pred_fallthru
      _
    // Predicated region
    $region50: #{state_space_svgp_forward.1} parent=1 // pred_check
      _
    $region51: #{state_space_svgp_forward.1} parent=1 // pred_check_branch
      %1701 = sbr.rel (0) target = $region53
    $region52: #{state_space_svgp_forward.1} parent=1 // pred_region
      _
    $region53: #{state_space_svgp_forward.1} parent=1 // pred_fallthru
      _
    // Predicated region
    $region54: #{state_space_svgp_forward.1} parent=1 // pred_check
      _
    $region55: #{state_space_svgp_forward.1} parent=1 // pred_check_branch
      %1703 = sbr.rel (0) target = $region57
    $region56: #{state_space_svgp_forward.1} parent=1 // pred_region
      _
    $region57: #{state_space_svgp_forward.1} parent=1 // pred_fallthru
      _
    // Predicated region
    $region58: #{state_space_svgp_forward.1} parent=1 // pred_check
      _
    $region59: #{state_space_svgp_forward.1} parent=1 // pred_check_branch
      %1705 = sbr.rel (0) target = $region61
    $region60: #{state_space_svgp_forward.1} parent=1 // pred_region
      _
    $region61: #{state_space_svgp_forward.1} parent=1 // pred_fallthru
      _
    %1706 = vsyncpa [#allocation3], 1

</llo_original>
